<compile_context>
chip_gen: v5e
topology: v5e:2x2
jax: 0.10.0
libtpu: 0.0.40
codegen_flags: <defaults>
</compile_context>

<pallas_src>
import numpy as np
import jax
import jax.numpy as jnp
from jax.experimental import pallas as pl
from jax.experimental.pallas import tpu as pltpu

SCAN_DIM = 480
SCAN_PAD = 512          # first-matmul K padded to a lane multiple
STATE_DIM = 6
ACT_DIM = 2
BN_EPS = 1e-5

# ---- packed small-parameter vector layout (one DMA instead of ~20) ----------
# Every segment starts at a 128-lane-aligned offset so in-kernel slices start
# lane-aligned (no lane rotations).
_VEC_SPEC = [
    ("b1", 512), ("g1", 512), ("be1", 512),
    ("b2", 512), ("g2", 512), ("be2", 512),
    ("b3", 32), ("g3", 32), ("be3", 32),
    ("b4", 64), ("g4", 64), ("be4", 64),
    ("b5", 32), ("g5", 32), ("be5", 32),
    ("b6", 64), ("g6", 64), ("be6", 64),
    ("b7", ACT_DIM), ("amean", ACT_DIM), ("astd", ACT_DIM),
]


def _build_layout():
    layout, off = {}, 0
    for name, d in _VEC_SPEC:
        layout[name] = (off, d)
        off += d + ((-d) % 128)
    return layout, off


_VEC_LAYOUT, _VEC_TOTAL = _build_layout()


def actor_kernel(scan_ref, state_ref, vec_ref,
                 w1_ref, w2_ref, w3_ref, w4_ref, w5_ref,
                 w6a_ref, w6b_ref, w7_ref, out_ref):
    def vec(name):
        off, d = _VEC_LAYOUT[name]
        return vec_ref[:, off:off + d]          # (1, d), f32, static slice

    inv_b = 1.0 / scan_ref.shape[0]

    def bn_relu(x, gname, bname):
        # BatchNorm1d, training-mode batch statistics, single-pass moments.
        mu = jnp.sum(x, axis=0, keepdims=True) * inv_b
        ex2 = jnp.sum(x * x, axis=0, keepdims=True) * inv_b
        var = jnp.maximum(ex2 - mu * mu, 0.0)
        y = (x - mu) * jax.lax.rsqrt(var + BN_EPS) * vec(gname) + vec(bname)
        return jnp.maximum(y, 0.0)

    def linear(x, w_ref, bname):
        # bf16 operands on the MXU, f32 accumulation, f32 bias add.
        return jnp.dot(x.astype(jnp.bfloat16), w_ref[...],
                       preferred_element_type=jnp.float32) + vec(bname)

    scan = scan_ref[...]
    state = state_ref[...]

    # scan branch: 480 (zero-padded to 512) -> 512 -> 512 -> 32
    h = bn_relu(linear(scan, w1_ref, "b1"), "g1", "be1")
    h = bn_relu(linear(h, w2_ref, "b2"), "g2", "be2")
    h_scan = bn_relu(linear(h, w3_ref, "b3"), "g3", "be3")

    # state branch: 6 -> 64 -> 32
    s = bn_relu(linear(state, w4_ref, "b4"), "g4", "be4")
    s = bn_relu(linear(s, w5_ref, "b5"), "g5", "be5")

    # cat([scan_branch, state_branch]) @ W6^T == h_scan @ W6^T[:32] + s @ W6^T[32:]
    z6 = (jnp.dot(h_scan.astype(jnp.bfloat16), w6a_ref[...],
                  preferred_element_type=jnp.float32)
          + jnp.dot(s.astype(jnp.bfloat16), w6b_ref[...],
                    preferred_element_type=jnp.float32)
          + vec("b6"))
    h6 = bn_relu(z6, "g6", "be6")

    out = jnp.tanh(linear(h6, w7_ref, "b7"))
    out_ref[...] = vec("astd") * out + vec("amean")


def init_params(key):
    """Deterministic parameter init mimicking PyTorch nn.Linear defaults."""
    def linear_params(k, in_dim, out_dim):
        kw, kb = jax.random.split(k)
        bound = 1.0 / np.sqrt(in_dim)
        w = jax.random.uniform(kw, (out_dim, in_dim), jnp.float32, -bound, bound)
        b = jax.random.uniform(kb, (out_dim,), jnp.float32, -bound, bound)
        return w, b

    keys = jax.random.split(key, 8)
    p = {}
    p["fc1"] = linear_params(keys[0], SCAN_DIM, 512)
    p["fc2"] = linear_params(keys[1], 512, 512)
    p["fc3"] = linear_params(keys[2], 512, 32)
    p["fc4"] = linear_params(keys[3], STATE_DIM, 64)
    p["fc5"] = linear_params(keys[4], 64, 32)
    p["fc6"] = linear_params(keys[5], 64, 64)
    p["fc7"] = linear_params(keys[6], 64, ACT_DIM)
    # BatchNorm affine params: PyTorch default init gamma=1, beta=0.
    for name, dim in [("bn1", 512), ("bn2", 512), ("bn3", 32),
                      ("bn4", 64), ("bn5", 32), ("bn6", 64)]:
        p[name] = (jnp.ones((dim,), jnp.float32), jnp.zeros((dim,), jnp.float32))
    p["act_mean"] = jnp.array([0.5, 0.0], jnp.float32)
    p["act_std"] = jnp.array([0.5, 1.0], jnp.float32)
    return p


def _pack_vec(params):
    entries = {
        "b1": params["fc1"][1], "g1": params["bn1"][0], "be1": params["bn1"][1],
        "b2": params["fc2"][1], "g2": params["bn2"][0], "be2": params["bn2"][1],
        "b3": params["fc3"][1], "g3": params["bn3"][0], "be3": params["bn3"][1],
        "b4": params["fc4"][1], "g4": params["bn4"][0], "be4": params["bn4"][1],
        "b5": params["fc5"][1], "g5": params["bn5"][0], "be5": params["bn5"][1],
        "b6": params["fc6"][1], "g6": params["bn6"][0], "be6": params["bn6"][1],
        "b7": params["fc7"][1], "amean": params["act_mean"], "astd": params["act_std"],
    }
    parts = []
    for name, d in _VEC_SPEC:
        v = jnp.asarray(entries[name], jnp.float32).reshape(-1)
        parts.append(v)
        pad = (-d) % 128
        if pad:
            parts.append(jnp.zeros((pad,), jnp.float32))
    return jnp.concatenate(parts).reshape(1, -1)   # (1, _VEC_TOTAL)


def mlp_actor_forward(obs, params):
    obs = obs.astype(jnp.float32)
    B = obs.shape[0]
    scan = obs[:, :SCAN_DIM]
    state = obs[:, SCAN_DIM:SCAN_DIM + STATE_DIM]
    # Zero-pad K of the first matmul to 512 (padded activation cols are zero,
    # so the extra W1 rows contribute nothing).
    scan_p = jnp.pad(scan, ((0, 0), (0, SCAN_PAD - SCAN_DIM)))

    def bf16_t(w):
        return w.T.astype(jnp.bfloat16)

    # TODO(synk): in an RL rollout loop, hoist this weight preprocessing out of
    # the per-step path and keep the bf16 weights VMEM-resident across calls
    # (cross-call prefetch / with_memory_space_constraint) to drop the per-call
    # HBM re-stream entirely.
    w1t = jnp.pad(params["fc1"][0].T,
                  ((0, SCAN_PAD - SCAN_DIM), (0, 0))).astype(jnp.bfloat16)  # (512,512)
    w2t = bf16_t(params["fc2"][0])          # (512, 512)
    w3t = bf16_t(params["fc3"][0])          # (512, 32)
    w4t = bf16_t(params["fc4"][0])          # (6, 64)
    w5t = bf16_t(params["fc5"][0])          # (64, 32)
    w6t = bf16_t(params["fc6"][0])          # (64, 64)
    w6a, w6b = w6t[:32, :], w6t[32:, :]     # scan-half / state-half of the concat
    w7t = bf16_t(params["fc7"][0])          # (64, 2)
    vec = _pack_vec(params)

    mm_elems = (SCAN_PAD * 512 + 512 * 512 + 512 * 32 + STATE_DIM * 64
                + 64 * 32 + 32 * 64 + 32 * 64 + 64 * ACT_DIM)
    flops = 2 * B * mm_elems
    weight_bytes = 2 * mm_elems                       # bf16 weights
    bytes_accessed = (weight_bytes + _VEC_TOTAL * 4
                      + B * (SCAN_PAD + STATE_DIM + ACT_DIM) * 4)
    transcendentals = (512 + 512 + 32 + 64 + 32 + 64) + B * ACT_DIM  # rsqrt + tanh

    inputs = [scan_p, state, vec, w1t, w2t, w3t, w4t, w5t, w6a, w6b, w7t]

    return pl.pallas_call(
        actor_kernel,
        out_shape=jax.ShapeDtypeStruct((B, ACT_DIM), jnp.float32),
        in_specs=[pl.BlockSpec(memory_space=pltpu.MemorySpace.VMEM)] * len(inputs),
        out_specs=pl.BlockSpec(memory_space=pltpu.MemorySpace.VMEM),
        cost_estimate=pl.CostEstimate(flops=flops,
                                      transcendentals=transcendentals,
                                      bytes_accessed=bytes_accessed),
    )(*inputs)


if __name__ == "__main__":
    key = jax.random.PRNGKey(0)
    k_params, k_obs = jax.random.split(key)
    params = init_params(k_params)

    batch = 8
    obs = jax.random.normal(k_obs, (batch, SCAN_DIM + STATE_DIM), jnp.float32)

    out = mlp_actor_forward(obs, params)
    jax.block_until_ready(out)
    assert out.shape == (batch, ACT_DIM) and out.dtype == jnp.float32
    assert bool(jnp.all(jnp.isfinite(out)))
    print("KERNEL_OK")
</pallas_src>

<mosaic_0001>
module attributes {stable_mosaic.version = 11 : i64} {
  func.func @actor_kernel(%arg0: memref<8x512xf32, #tpu.memory_space<vmem>>, %arg1: memref<8x6xf32, #tpu.memory_space<vmem>>, %arg2: memref<1x4992xf32, #tpu.memory_space<vmem>>, %arg3: memref<512x512xbf16, #tpu.memory_space<vmem>>, %arg4: memref<512x512xbf16, #tpu.memory_space<vmem>>, %arg5: memref<512x32xbf16, #tpu.memory_space<vmem>>, %arg6: memref<6x64xbf16, #tpu.memory_space<vmem>>, %arg7: memref<64x32xbf16, #tpu.memory_space<vmem>>, %arg8: memref<32x64xbf16, #tpu.memory_space<vmem>>, %arg9: memref<32x64xbf16, #tpu.memory_space<vmem>>, %arg10: memref<64x2xbf16, #tpu.memory_space<vmem>>, %arg11: memref<8x2xf32, #tpu.memory_space<vmem>>) attributes {dimension_semantics = [], scalar_prefetch = 0 : i64, scratch_operands = 0 : i64, tpu.core_type = #tpu.core_type<tc>} {
    %c0 = arith.constant 0 : index
    %c0_0 = arith.constant 0 : index
    %0 = vector.load %arg0[%c0, %c0_0] : memref<8x512xf32, #tpu.memory_space<vmem>>, vector<8x512xf32>
    %c0_1 = arith.constant 0 : index
    %c0_2 = arith.constant 0 : index
    %1 = vector.load %arg1[%c0_1, %c0_2] : memref<8x6xf32, #tpu.memory_space<vmem>>, vector<8x6xf32>
    %2 = arith.truncf %0 : vector<8x512xf32> to vector<8x512xbf16>
    %c0_3 = arith.constant 0 : index
    %c0_4 = arith.constant 0 : index
    %3 = vector.load %arg3[%c0_3, %c0_4] : memref<512x512xbf16, #tpu.memory_space<vmem>>, vector<512x512xbf16>
    %cst = arith.constant dense<0.000000e+00> : vector<8x512xf32>
    %4 = tpu.matmul %2, %3, %cst {dimension_numbers = #tpu.dot_dimension_numbers<[1], [0], [0], [1], [0, 0, 1, 1], [], []>} : vector<8x512xbf16>, vector<512x512xbf16>, vector<8x512xf32> -> vector<8x512xf32>
    %c0_5 = arith.constant 0 : index
    %c0_6 = arith.constant 0 : index
    %5 = vector.load %arg2[%c0_5, %c0_6] : memref<1x4992xf32, #tpu.memory_space<vmem>>, vector<1x512xf32>
    %6 = vector.broadcast %5 : vector<1x512xf32> to vector<8x512xf32>
    %7 = arith.addf %4, %6 : vector<8x512xf32>
    %cst_7 = arith.constant dense<0.000000e+00> : vector<512xf32>
    %8 = vector.multi_reduction <add>, %7, %cst_7 [0] : vector<8x512xf32> to vector<512xf32>
    %9 = vector.shape_cast %8 : vector<512xf32> to vector<1x512xf32>
    %cst_8 = arith.constant 1.250000e-01 : f32
    %10 = vector.broadcast %cst_8 : f32 to vector<1x512xf32>
    %11 = arith.mulf %9, %10 : vector<1x512xf32>
    %12 = arith.mulf %7, %7 : vector<8x512xf32>
    %cst_9 = arith.constant dense<0.000000e+00> : vector<512xf32>
    %13 = vector.multi_reduction <add>, %12, %cst_9 [0] : vector<8x512xf32> to vector<512xf32>
    %14 = vector.shape_cast %13 : vector<512xf32> to vector<1x512xf32>
    %cst_10 = arith.constant 1.250000e-01 : f32
    %15 = vector.broadcast %cst_10 : f32 to vector<1x512xf32>
    %16 = arith.mulf %14, %15 : vector<1x512xf32>
    %17 = arith.mulf %11, %11 : vector<1x512xf32>
    %18 = arith.subf %16, %17 : vector<1x512xf32>
    %cst_11 = arith.constant 0.000000e+00 : f32
    %19 = vector.broadcast %cst_11 : f32 to vector<1x512xf32>
    %20 = arith.maximumf %18, %19 : vector<1x512xf32>
    %21 = vector.broadcast %11 : vector<1x512xf32> to vector<8x512xf32>
    %22 = arith.subf %7, %21 : vector<8x512xf32>
    %cst_12 = arith.constant 9.99999974E-6 : f32
    %23 = vector.broadcast %cst_12 : f32 to vector<1x512xf32>
    %24 = arith.addf %20, %23 : vector<1x512xf32>
    %25 = math.rsqrt %24 : vector<1x512xf32>
    %26 = vector.broadcast %25 : vector<1x512xf32> to vector<8x512xf32>
    %27 = arith.mulf %22, %26 : vector<8x512xf32>
    %c0_13 = arith.constant 0 : index
    %c512 = arith.constant 512 : index
    %28 = vector.load %arg2[%c0_13, %c512] : memref<1x4992xf32, #tpu.memory_space<vmem>>, vector<1x512xf32>
    %29 = vector.broadcast %28 : vector<1x512xf32> to vector<8x512xf32>
    %30 = arith.mulf %27, %29 : vector<8x512xf32>
    %c0_14 = arith.constant 0 : index
    %c1024 = arith.constant 1024 : index
    %31 = vector.load %arg2[%c0_14, %c1024] : memref<1x4992xf32, #tpu.memory_space<vmem>>, vector<1x512xf32>
    %32 = vector.broadcast %31 : vector<1x512xf32> to vector<8x512xf32>
    %33 = arith.addf %30, %32 : vector<8x512xf32>
    %cst_15 = arith.constant 0.000000e+00 : f32
    %34 = vector.broadcast %cst_15 : f32 to vector<8x512xf32>
    %35 = arith.maximumf %33, %34 : vector<8x512xf32>
    %36 = arith.truncf %35 : vector<8x512xf32> to vector<8x512xbf16>
    %c0_16 = arith.constant 0 : index
    %c0_17 = arith.constant 0 : index
    %37 = vector.load %arg4[%c0_16, %c0_17] : memref<512x512xbf16, #tpu.memory_space<vmem>>, vector<512x512xbf16>
    %cst_18 = arith.constant dense<0.000000e+00> : vector<8x512xf32>
    %38 = tpu.matmul %36, %37, %cst_18 {dimension_numbers = #tpu.dot_dimension_numbers<[1], [0], [0], [1], [0, 0, 1, 1], [], []>} : vector<8x512xbf16>, vector<512x512xbf16>, vector<8x512xf32> -> vector<8x512xf32>
    %c0_19 = arith.constant 0 : index
    %c1536 = arith.constant 1536 : index
    %39 = vector.load %arg2[%c0_19, %c1536] : memref<1x4992xf32, #tpu.memory_space<vmem>>, vector<1x512xf32>
    %40 = vector.broadcast %39 : vector<1x512xf32> to vector<8x512xf32>
    %41 = arith.addf %38, %40 : vector<8x512xf32>
    %cst_20 = arith.constant dense<0.000000e+00> : vector<512xf32>
    %42 = vector.multi_reduction <add>, %41, %cst_20 [0] : vector<8x512xf32> to vector<512xf32>
    %43 = vector.shape_cast %42 : vector<512xf32> to vector<1x512xf32>
    %cst_21 = arith.constant 1.250000e-01 : f32
    %44 = vector.broadcast %cst_21 : f32 to vector<1x512xf32>
    %45 = arith.mulf %43, %44 : vector<1x512xf32>
    %46 = arith.mulf %41, %41 : vector<8x512xf32>
    %cst_22 = arith.constant dense<0.000000e+00> : vector<512xf32>
    %47 = vector.multi_reduction <add>, %46, %cst_22 [0] : vector<8x512xf32> to vector<512xf32>
    %48 = vector.shape_cast %47 : vector<512xf32> to vector<1x512xf32>
    %cst_23 = arith.constant 1.250000e-01 : f32
    %49 = vector.broadcast %cst_23 : f32 to vector<1x512xf32>
    %50 = arith.mulf %48, %49 : vector<1x512xf32>
    %51 = arith.mulf %45, %45 : vector<1x512xf32>
    %52 = arith.subf %50, %51 : vector<1x512xf32>
    %cst_24 = arith.constant 0.000000e+00 : f32
    %53 = vector.broadcast %cst_24 : f32 to vector<1x512xf32>
    %54 = arith.maximumf %52, %53 : vector<1x512xf32>
    %55 = vector.broadcast %45 : vector<1x512xf32> to vector<8x512xf32>
    %56 = arith.subf %41, %55 : vector<8x512xf32>
    %cst_25 = arith.constant 9.99999974E-6 : f32
    %57 = vector.broadcast %cst_25 : f32 to vector<1x512xf32>
    %58 = arith.addf %54, %57 : vector<1x512xf32>
    %59 = math.rsqrt %58 : vector<1x512xf32>
    %60 = vector.broadcast %59 : vector<1x512xf32> to vector<8x512xf32>
    %61 = arith.mulf %56, %60 : vector<8x512xf32>
    %c0_26 = arith.constant 0 : index
    %c2048 = arith.constant 2048 : index
    %62 = vector.load %arg2[%c0_26, %c2048] : memref<1x4992xf32, #tpu.memory_space<vmem>>, vector<1x512xf32>
    %63 = vector.broadcast %62 : vector<1x512xf32> to vector<8x512xf32>
    %64 = arith.mulf %61, %63 : vector<8x512xf32>
    %c0_27 = arith.constant 0 : index
    %c2560 = arith.constant 2560 : index
    %65 = vector.load %arg2[%c0_27, %c2560] : memref<1x4992xf32, #tpu.memory_space<vmem>>, vector<1x512xf32>
    %66 = vector.broadcast %65 : vector<1x512xf32> to vector<8x512xf32>
    %67 = arith.addf %64, %66 : vector<8x512xf32>
    %cst_28 = arith.constant 0.000000e+00 : f32
    %68 = vector.broadcast %cst_28 : f32 to vector<8x512xf32>
    %69 = arith.maximumf %67, %68 : vector<8x512xf32>
    %70 = arith.truncf %69 : vector<8x512xf32> to vector<8x512xbf16>
    %c0_29 = arith.constant 0 : index
    %c0_30 = arith.constant 0 : index
    %71 = vector.load %arg5[%c0_29, %c0_30] : memref<512x32xbf16, #tpu.memory_space<vmem>>, vector<512x32xbf16>
    %cst_31 = arith.constant dense<0.000000e+00> : vector<8x32xf32>
    %72 = tpu.matmul %70, %71, %cst_31 {dimension_numbers = #tpu.dot_dimension_numbers<[1], [0], [0], [1], [0, 0, 1, 1], [], []>} : vector<8x512xbf16>, vector<512x32xbf16>, vector<8x32xf32> -> vector<8x32xf32>
    %c0_32 = arith.constant 0 : index
    %c3072 = arith.constant 3072 : index
    %73 = vector.load %arg2[%c0_32, %c3072] : memref<1x4992xf32, #tpu.memory_space<vmem>>, vector<1x32xf32>
    %74 = vector.broadcast %73 : vector<1x32xf32> to vector<8x32xf32>
    %75 = arith.addf %72, %74 : vector<8x32xf32>
    %cst_33 = arith.constant dense<0.000000e+00> : vector<32xf32>
    %76 = vector.multi_reduction <add>, %75, %cst_33 [0] : vector<8x32xf32> to vector<32xf32>
    %77 = vector.shape_cast %76 : vector<32xf32> to vector<1x32xf32>
    %cst_34 = arith.constant 1.250000e-01 : f32
    %78 = vector.broadcast %cst_34 : f32 to vector<1x32xf32>
    %79 = arith.mulf %77, %78 : vector<1x32xf32>
    %80 = arith.mulf %75, %75 : vector<8x32xf32>
    %cst_35 = arith.constant dense<0.000000e+00> : vector<32xf32>
    %81 = vector.multi_reduction <add>, %80, %cst_35 [0] : vector<8x32xf32> to vector<32xf32>
    %82 = vector.shape_cast %81 : vector<32xf32> to vector<1x32xf32>
    %cst_36 = arith.constant 1.250000e-01 : f32
    %83 = vector.broadcast %cst_36 : f32 to vector<1x32xf32>
    %84 = arith.mulf %82, %83 : vector<1x32xf32>
    %85 = arith.mulf %79, %79 : vector<1x32xf32>
    %86 = arith.subf %84, %85 : vector<1x32xf32>
    %cst_37 = arith.constant 0.000000e+00 : f32
    %87 = vector.broadcast %cst_37 : f32 to vector<1x32xf32>
    %88 = arith.maximumf %86, %87 : vector<1x32xf32>
    %89 = vector.broadcast %79 : vector<1x32xf32> to vector<8x32xf32>
    %90 = arith.subf %75, %89 : vector<8x32xf32>
    %cst_38 = arith.constant 9.99999974E-6 : f32
    %91 = vector.broadcast %cst_38 : f32 to vector<1x32xf32>
    %92 = arith.addf %88, %91 : vector<1x32xf32>
    %93 = math.rsqrt %92 : vector<1x32xf32>
    %94 = vector.broadcast %93 : vector<1x32xf32> to vector<8x32xf32>
    %95 = arith.mulf %90, %94 : vector<8x32xf32>
    %c0_39 = arith.constant 0 : index
    %c3200 = arith.constant 3200 : index
    %96 = vector.load %arg2[%c0_39, %c3200] : memref<1x4992xf32, #tpu.memory_space<vmem>>, vector<1x32xf32>
    %97 = vector.broadcast %96 : vector<1x32xf32> to vector<8x32xf32>
    %98 = arith.mulf %95, %97 : vector<8x32xf32>
    %c0_40 = arith.constant 0 : index
    %c3328 = arith.constant 3328 : index
    %99 = vector.load %arg2[%c0_40, %c3328] : memref<1x4992xf32, #tpu.memory_space<vmem>>, vector<1x32xf32>
    %100 = vector.broadcast %99 : vector<1x32xf32> to vector<8x32xf32>
    %101 = arith.addf %98, %100 : vector<8x32xf32>
    %cst_41 = arith.constant 0.000000e+00 : f32
    %102 = vector.broadcast %cst_41 : f32 to vector<8x32xf32>
    %103 = arith.maximumf %101, %102 : vector<8x32xf32>
    %104 = arith.truncf %1 : vector<8x6xf32> to vector<8x6xbf16>
    %c0_42 = arith.constant 0 : index
    %c0_43 = arith.constant 0 : index
    %105 = vector.load %arg6[%c0_42, %c0_43] : memref<6x64xbf16, #tpu.memory_space<vmem>>, vector<6x64xbf16>
    %cst_44 = arith.constant dense<0.000000e+00> : vector<8x64xf32>
    %106 = tpu.matmul %104, %105, %cst_44 {dimension_numbers = #tpu.dot_dimension_numbers<[1], [0], [0], [1], [0, 0, 1, 1], [], []>} : vector<8x6xbf16>, vector<6x64xbf16>, vector<8x64xf32> -> vector<8x64xf32>
    %c0_45 = arith.constant 0 : index
    %c3456 = arith.constant 3456 : index
    %107 = vector.load %arg2[%c0_45, %c3456] : memref<1x4992xf32, #tpu.memory_space<vmem>>, vector<1x64xf32>
    %108 = vector.broadcast %107 : vector<1x64xf32> to vector<8x64xf32>
    %109 = arith.addf %106, %108 : vector<8x64xf32>
    %cst_46 = arith.constant dense<0.000000e+00> : vector<64xf32>
    %110 = vector.multi_reduction <add>, %109, %cst_46 [0] : vector<8x64xf32> to vector<64xf32>
    %111 = vector.shape_cast %110 : vector<64xf32> to vector<1x64xf32>
    %cst_47 = arith.constant 1.250000e-01 : f32
    %112 = vector.broadcast %cst_47 : f32 to vector<1x64xf32>
    %113 = arith.mulf %111, %112 : vector<1x64xf32>
    %114 = arith.mulf %109, %109 : vector<8x64xf32>
    %cst_48 = arith.constant dense<0.000000e+00> : vector<64xf32>
    %115 = vector.multi_reduction <add>, %114, %cst_48 [0] : vector<8x64xf32> to vector<64xf32>
    %116 = vector.shape_cast %115 : vector<64xf32> to vector<1x64xf32>
    %cst_49 = arith.constant 1.250000e-01 : f32
    %117 = vector.broadcast %cst_49 : f32 to vector<1x64xf32>
    %118 = arith.mulf %116, %117 : vector<1x64xf32>
    %119 = arith.mulf %113, %113 : vector<1x64xf32>
    %120 = arith.subf %118, %119 : vector<1x64xf32>
    %cst_50 = arith.constant 0.000000e+00 : f32
    %121 = vector.broadcast %cst_50 : f32 to vector<1x64xf32>
    %122 = arith.maximumf %120, %121 : vector<1x64xf32>
    %123 = vector.broadcast %113 : vector<1x64xf32> to vector<8x64xf32>
    %124 = arith.subf %109, %123 : vector<8x64xf32>
    %cst_51 = arith.constant 9.99999974E-6 : f32
    %125 = vector.broadcast %cst_51 : f32 to vector<1x64xf32>
    %126 = arith.addf %122, %125 : vector<1x64xf32>
    %127 = math.rsqrt %126 : vector<1x64xf32>
    %128 = vector.broadcast %127 : vector<1x64xf32> to vector<8x64xf32>
    %129 = arith.mulf %124, %128 : vector<8x64xf32>
    %c0_52 = arith.constant 0 : index
    %c3584 = arith.constant 3584 : index
    %130 = vector.load %arg2[%c0_52, %c3584] : memref<1x4992xf32, #tpu.memory_space<vmem>>, vector<1x64xf32>
    %131 = vector.broadcast %130 : vector<1x64xf32> to vector<8x64xf32>
    %132 = arith.mulf %129, %131 : vector<8x64xf32>
    %c0_53 = arith.constant 0 : index
    %c3712 = arith.constant 3712 : index
    %133 = vector.load %arg2[%c0_53, %c3712] : memref<1x4992xf32, #tpu.memory_space<vmem>>, vector<1x64xf32>
    %134 = vector.broadcast %133 : vector<1x64xf32> to vector<8x64xf32>
    %135 = arith.addf %132, %134 : vector<8x64xf32>
    %cst_54 = arith.constant 0.000000e+00 : f32
    %136 = vector.broadcast %cst_54 : f32 to vector<8x64xf32>
    %137 = arith.maximumf %135, %136 : vector<8x64xf32>
    %138 = arith.truncf %137 : vector<8x64xf32> to vector<8x64xbf16>
    %c0_55 = arith.constant 0 : index
    %c0_56 = arith.constant 0 : index
    %139 = vector.load %arg7[%c0_55, %c0_56] : memref<64x32xbf16, #tpu.memory_space<vmem>>, vector<64x32xbf16>
    %cst_57 = arith.constant dense<0.000000e+00> : vector<8x32xf32>
    %140 = tpu.matmul %138, %139, %cst_57 {dimension_numbers = #tpu.dot_dimension_numbers<[1], [0], [0], [1], [0, 0, 1, 1], [], []>} : vector<8x64xbf16>, vector<64x32xbf16>, vector<8x32xf32> -> vector<8x32xf32>
    %c0_58 = arith.constant 0 : index
    %c3840 = arith.constant 3840 : index
    %141 = vector.load %arg2[%c0_58, %c3840] : memref<1x4992xf32, #tpu.memory_space<vmem>>, vector<1x32xf32>
    %142 = vector.broadcast %141 : vector<1x32xf32> to vector<8x32xf32>
    %143 = arith.addf %140, %142 : vector<8x32xf32>
    %cst_59 = arith.constant dense<0.000000e+00> : vector<32xf32>
    %144 = vector.multi_reduction <add>, %143, %cst_59 [0] : vector<8x32xf32> to vector<32xf32>
    %145 = vector.shape_cast %144 : vector<32xf32> to vector<1x32xf32>
    %cst_60 = arith.constant 1.250000e-01 : f32
    %146 = vector.broadcast %cst_60 : f32 to vector<1x32xf32>
    %147 = arith.mulf %145, %146 : vector<1x32xf32>
    %148 = arith.mulf %143, %143 : vector<8x32xf32>
    %cst_61 = arith.constant dense<0.000000e+00> : vector<32xf32>
    %149 = vector.multi_reduction <add>, %148, %cst_61 [0] : vector<8x32xf32> to vector<32xf32>
    %150 = vector.shape_cast %149 : vector<32xf32> to vector<1x32xf32>
    %cst_62 = arith.constant 1.250000e-01 : f32
    %151 = vector.broadcast %cst_62 : f32 to vector<1x32xf32>
    %152 = arith.mulf %150, %151 : vector<1x32xf32>
    %153 = arith.mulf %147, %147 : vector<1x32xf32>
    %154 = arith.subf %152, %153 : vector<1x32xf32>
    %cst_63 = arith.constant 0.000000e+00 : f32
    %155 = vector.broadcast %cst_63 : f32 to vector<1x32xf32>
    %156 = arith.maximumf %154, %155 : vector<1x32xf32>
    %157 = vector.broadcast %147 : vector<1x32xf32> to vector<8x32xf32>
    %158 = arith.subf %143, %157 : vector<8x32xf32>
    %cst_64 = arith.constant 9.99999974E-6 : f32
    %159 = vector.broadcast %cst_64 : f32 to vector<1x32xf32>
    %160 = arith.addf %156, %159 : vector<1x32xf32>
    %161 = math.rsqrt %160 : vector<1x32xf32>
    %162 = vector.broadcast %161 : vector<1x32xf32> to vector<8x32xf32>
    %163 = arith.mulf %158, %162 : vector<8x32xf32>
    %c0_65 = arith.constant 0 : index
    %c3968 = arith.constant 3968 : index
    %164 = vector.load %arg2[%c0_65, %c3968] : memref<1x4992xf32, #tpu.memory_space<vmem>>, vector<1x32xf32>
    %165 = vector.broadcast %164 : vector<1x32xf32> to vector<8x32xf32>
    %166 = arith.mulf %163, %165 : vector<8x32xf32>
    %c0_66 = arith.constant 0 : index
    %c4096 = arith.constant 4096 : index
    %167 = vector.load %arg2[%c0_66, %c4096] : memref<1x4992xf32, #tpu.memory_space<vmem>>, vector<1x32xf32>
    %168 = vector.broadcast %167 : vector<1x32xf32> to vector<8x32xf32>
    %169 = arith.addf %166, %168 : vector<8x32xf32>
    %cst_67 = arith.constant 0.000000e+00 : f32
    %170 = vector.broadcast %cst_67 : f32 to vector<8x32xf32>
    %171 = arith.maximumf %169, %170 : vector<8x32xf32>
    %172 = arith.truncf %103 : vector<8x32xf32> to vector<8x32xbf16>
    %c0_68 = arith.constant 0 : index
    %c0_69 = arith.constant 0 : index
    %173 = vector.load %arg8[%c0_68, %c0_69] : memref<32x64xbf16, #tpu.memory_space<vmem>>, vector<32x64xbf16>
    %cst_70 = arith.constant dense<0.000000e+00> : vector<8x64xf32>
    %174 = tpu.matmul %172, %173, %cst_70 {dimension_numbers = #tpu.dot_dimension_numbers<[1], [0], [0], [1], [0, 0, 1, 1], [], []>} : vector<8x32xbf16>, vector<32x64xbf16>, vector<8x64xf32> -> vector<8x64xf32>
    %175 = arith.truncf %171 : vector<8x32xf32> to vector<8x32xbf16>
    %c0_71 = arith.constant 0 : index
    %c0_72 = arith.constant 0 : index
    %176 = vector.load %arg9[%c0_71, %c0_72] : memref<32x64xbf16, #tpu.memory_space<vmem>>, vector<32x64xbf16>
    %cst_73 = arith.constant dense<0.000000e+00> : vector<8x64xf32>
    %177 = tpu.matmul %175, %176, %cst_73 {dimension_numbers = #tpu.dot_dimension_numbers<[1], [0], [0], [1], [0, 0, 1, 1], [], []>} : vector<8x32xbf16>, vector<32x64xbf16>, vector<8x64xf32> -> vector<8x64xf32>
    %178 = arith.addf %174, %177 : vector<8x64xf32>
    %c0_74 = arith.constant 0 : index
    %c4224 = arith.constant 4224 : index
    %179 = vector.load %arg2[%c0_74, %c4224] : memref<1x4992xf32, #tpu.memory_space<vmem>>, vector<1x64xf32>
    %180 = vector.broadcast %179 : vector<1x64xf32> to vector<8x64xf32>
    %181 = arith.addf %178, %180 : vector<8x64xf32>
    %cst_75 = arith.constant dense<0.000000e+00> : vector<64xf32>
    %182 = vector.multi_reduction <add>, %181, %cst_75 [0] : vector<8x64xf32> to vector<64xf32>
    %183 = vector.shape_cast %182 : vector<64xf32> to vector<1x64xf32>
    %cst_76 = arith.constant 1.250000e-01 : f32
    %184 = vector.broadcast %cst_76 : f32 to vector<1x64xf32>
    %185 = arith.mulf %183, %184 : vector<1x64xf32>
    %186 = arith.mulf %181, %181 : vector<8x64xf32>
    %cst_77 = arith.constant dense<0.000000e+00> : vector<64xf32>
    %187 = vector.multi_reduction <add>, %186, %cst_77 [0] : vector<8x64xf32> to vector<64xf32>
    %188 = vector.shape_cast %187 : vector<64xf32> to vector<1x64xf32>
    %cst_78 = arith.constant 1.250000e-01 : f32
    %189 = vector.broadcast %cst_78 : f32 to vector<1x64xf32>
    %190 = arith.mulf %188, %189 : vector<1x64xf32>
    %191 = arith.mulf %185, %185 : vector<1x64xf32>
    %192 = arith.subf %190, %191 : vector<1x64xf32>
    %cst_79 = arith.constant 0.000000e+00 : f32
    %193 = vector.broadcast %cst_79 : f32 to vector<1x64xf32>
    %194 = arith.maximumf %192, %193 : vector<1x64xf32>
    %195 = vector.broadcast %185 : vector<1x64xf32> to vector<8x64xf32>
    %196 = arith.subf %181, %195 : vector<8x64xf32>
    %cst_80 = arith.constant 9.99999974E-6 : f32
    %197 = vector.broadcast %cst_80 : f32 to vector<1x64xf32>
    %198 = arith.addf %194, %197 : vector<1x64xf32>
    %199 = math.rsqrt %198 : vector<1x64xf32>
    %200 = vector.broadcast %199 : vector<1x64xf32> to vector<8x64xf32>
    %201 = arith.mulf %196, %200 : vector<8x64xf32>
    %c0_81 = arith.constant 0 : index
    %c4352 = arith.constant 4352 : index
    %202 = vector.load %arg2[%c0_81, %c4352] : memref<1x4992xf32, #tpu.memory_space<vmem>>, vector<1x64xf32>
    %203 = vector.broadcast %202 : vector<1x64xf32> to vector<8x64xf32>
    %204 = arith.mulf %201, %203 : vector<8x64xf32>
    %c0_82 = arith.constant 0 : index
    %c4480 = arith.constant 4480 : index
    %205 = vector.load %arg2[%c0_82, %c4480] : memref<1x4992xf32, #tpu.memory_space<vmem>>, vector<1x64xf32>
    %206 = vector.broadcast %205 : vector<1x64xf32> to vector<8x64xf32>
    %207 = arith.addf %204, %206 : vector<8x64xf32>
    %cst_83 = arith.constant 0.000000e+00 : f32
    %208 = vector.broadcast %cst_83 : f32 to vector<8x64xf32>
    %209 = arith.maximumf %207, %208 : vector<8x64xf32>
    %210 = arith.truncf %209 : vector<8x64xf32> to vector<8x64xbf16>
    %c0_84 = arith.constant 0 : index
    %c0_85 = arith.constant 0 : index
    %211 = vector.load %arg10[%c0_84, %c0_85] : memref<64x2xbf16, #tpu.memory_space<vmem>>, vector<64x2xbf16>
    %cst_86 = arith.constant dense<0.000000e+00> : vector<8x2xf32>
    %212 = tpu.matmul %210, %211, %cst_86 {dimension_numbers = #tpu.dot_dimension_numbers<[1], [0], [0], [1], [0, 0, 1, 1], [], []>} : vector<8x64xbf16>, vector<64x2xbf16>, vector<8x2xf32> -> vector<8x2xf32>
    %c0_87 = arith.constant 0 : index
    %c4608 = arith.constant 4608 : index
    %213 = vector.load %arg2[%c0_87, %c4608] : memref<1x4992xf32, #tpu.memory_space<vmem>>, vector<1x2xf32>
    %214 = vector.broadcast %213 : vector<1x2xf32> to vector<8x2xf32>
    %215 = arith.addf %212, %214 : vector<8x2xf32>
    %216 = math.tanh %215 : vector<8x2xf32>
    %c0_88 = arith.constant 0 : index
    %c4864 = arith.constant 4864 : index
    %217 = vector.load %arg2[%c0_88, %c4864] : memref<1x4992xf32, #tpu.memory_space<vmem>>, vector<1x2xf32>
    %218 = vector.broadcast %217 : vector<1x2xf32> to vector<8x2xf32>
    %219 = arith.mulf %218, %216 : vector<8x2xf32>
    %c0_89 = arith.constant 0 : index
    %c4736 = arith.constant 4736 : index
    %220 = vector.load %arg2[%c0_89, %c4736] : memref<1x4992xf32, #tpu.memory_space<vmem>>, vector<1x2xf32>
    %221 = vector.broadcast %220 : vector<1x2xf32> to vector<8x2xf32>
    %222 = arith.addf %219, %221 : vector<8x2xf32>
    %c0_90 = arith.constant 0 : index
    %c0_91 = arith.constant 0 : index
    %223 = vector.load %arg11[%c0_90, %c0_91] : memref<8x2xf32, #tpu.memory_space<vmem>>, vector<8x2xf32>
    tpu.vector_store %arg11[%c0_90, %c0_91], %222 {strides = array<i32>} : memref<8x2xf32, #tpu.memory_space<vmem>>, vector<8x2xf32>,
    return
  }
}

</mosaic_0001>

<llo_original>
// kernel: tpu_custom_call.1
$region0: #{tpu_custom_call.1}
  #allocation0 [shape = 'u32[]', space=smem, size = 0x4, offset = 0x4, fixed_abs, tag = 'smem constant byte address 0x4 - core index']
  #allocation1 [shape = 'u32[72,128]{1,0:T(1,128)}', space=vmem, size = 0x9000, scoped, tag = 'internal scratch']
  %s0 = inlined_call_operand.vmem [shape: f32[8,512], index: 0, kind: input, shape index: {}]
  %s1 = inlined_call_operand.vmem [shape: f32[8,6], index: 1, kind: input, shape index: {}]
  %s2 = inlined_call_operand.vmem [shape: f32[1,4992], index: 2, kind: input, shape index: {}]
  %s3 = inlined_call_operand.hbm [shape: bf16[512,512], index: 3, kind: input, shape index: {}]
  %s4 = inlined_call_operand.hbm [shape: bf16[512,512], index: 4, kind: input, shape index: {}]
  %s5 = inlined_call_operand.vmem [shape: bf16[512,32], index: 5, kind: input, shape index: {}]
  %s6 = inlined_call_operand.vmem [shape: bf16[6,64], index: 6, kind: input, shape index: {}]
  %s7 = inlined_call_operand.vmem [shape: bf16[64,32], index: 7, kind: input, shape index: {}]
  %s8 = inlined_call_operand.vmem [shape: bf16[32,64], index: 8, kind: input, shape index: {}]
  %s9 = inlined_call_operand.vmem [shape: bf16[32,64], index: 9, kind: input, shape index: {}]
  %s10 = inlined_call_operand.vmem [shape: bf16[64,2], index: 10, kind: input, shape index: {}]
  %s11 = inlined_call_operand.vmem [shape: f32[8,2], index: 11, kind: output, shape index: {}]
  %s12 = sld [smem:[#allocation0]]
  $region62: #{tpu_custom_call.1} parent=0
    _
  %s14 = ssub.s32 1, %s12
  %s15 = scalar_select 0, %s14, %s12
  $region1: #{tpu_custom_call.1} parent=0
    #allocation2 [shape = 'u8[524288]{0}', space=vmem, size = 0x80000, scoped, tag = 'input window, operand 3, single buffered']
    #allocation3 [shape = 's32[1]{0}', space=sflag, size = 0x4, scoped, tag = 'scoped memory for tpu_custom_call.1']
    #allocation4 [shape = 'u8[524288]{0}', space=vmem, size = 0x80000, scoped, tag = 'input window, operand 4, single buffered']
    #allocation5 [shape = 's32[1]{0}', space=sflag, size = 0x4, scoped, tag = 'scoped memory for tpu_custom_call.1']
    %16 = vsyncpa [#allocation3], 0
    %17 = vsyncpa [#allocation5], 0
    // Predicated region
    $region2: #{tpu_custom_call.1} parent=1 // pred_check
      _
    $region3: #{tpu_custom_call.1} parent=1 // pred_check_branch
      %19 = sbr.rel (0) target = $region5
    $region4: #{tpu_custom_call.1} parent=1 // pred_region
      _
    $region5: #{tpu_custom_call.1} parent=1 // pred_fallthru
      _
    // Predicated region
    $region6: #{tpu_custom_call.1} parent=1 // pred_check
      _
    $region7: #{tpu_custom_call.1} parent=1 // pred_check_branch
      %21 = sbr.rel (0) target = $region9
    $region8: #{tpu_custom_call.1} parent=1 // pred_region
      _
    $region9: #{tpu_custom_call.1} parent=1 // pred_fallthru
      _
    // Predicated region
    $region10: #{tpu_custom_call.1} parent=1 // pred_check
      _
    $region11: #{tpu_custom_call.1} parent=1 // pred_check_branch
      %23 = sbr.rel (0) target = $region13
    $region12: #{tpu_custom_call.1} parent=1 // pred_region
      _
    $region13: #{tpu_custom_call.1} parent=1 // pred_fallthru
      _
    // Predicated region
    $region14: #{tpu_custom_call.1} parent=1 // pred_check
      _
    $region15: #{tpu_custom_call.1} parent=1 // pred_check_branch
      %25 = sbr.rel (0) target = $region17
    $region16: #{tpu_custom_call.1} parent=1 // pred_region
      %27 = vsyncadd [#allocation3], 0
      %s28 = sshll.u32 %s3, 4
      %s29 = int_to_ptr.hbm [resolvable:$true] %s28
      %s30 = sshll.u32 [#allocation2], 4
      %s31 = int_to_ptr.vmem [resolvable:$true] %s30
      %36 = dma.hbm_to_vmem [thread:$0]  %s29, 16384, %s31, [#allocation3], 256, 256, 16
    $region17: #{tpu_custom_call.1} parent=1 // pred_fallthru
      _
    // Predicated region
    $region18: #{tpu_custom_call.1} parent=1 // pred_check
      _
    $region19: #{tpu_custom_call.1} parent=1 // pred_check_branch
      %38 = sbr.rel (0) target = $region21
    $region20: #{tpu_custom_call.1} parent=1 // pred_region
      %40 = vsyncadd [#allocation5], 0
      %s41 = sshll.u32 %s4, 4
      %s42 = int_to_ptr.hbm [resolvable:$true] %s41
      %s43 = sshll.u32 [#allocation4], 4
      %s44 = int_to_ptr.vmem [resolvable:$true] %s43
      %49 = dma.hbm_to_vmem [thread:$0]  %s42, 16384, %s44, [#allocation5], 256, 256, 16
    $region21: #{tpu_custom_call.1} parent=1 // pred_fallthru
      _
    // Predicated region
    $region22: #{tpu_custom_call.1} parent=1 // pred_check
      _
    $region23: #{tpu_custom_call.1} parent=1 // pred_check_branch
      %51 = sbr.rel (0) target = $region25
    $region24: #{tpu_custom_call.1} parent=1 // pred_region
      _
    $region25: #{tpu_custom_call.1} parent=1 // pred_fallthru
      _
    // Predicated region
    $region26: #{tpu_custom_call.1} parent=1 // pred_check
      _
    $region27: #{tpu_custom_call.1} parent=1 // pred_check_branch
      %53 = sbr.rel (0) target = $region29
    $region28: #{tpu_custom_call.1} parent=1 // pred_region
      _
    $region29: #{tpu_custom_call.1} parent=1 // pred_fallthru
      _
    // Predicated region
    $region30: #{tpu_custom_call.1} parent=1 // pred_check
      _
    $region31: #{tpu_custom_call.1} parent=1 // pred_check_branch
      %55 = sbr.rel (0) target = $region33
    $region32: #{tpu_custom_call.1} parent=1 // pred_region
      _
    $region33: #{tpu_custom_call.1} parent=1 // pred_fallthru
      _
    // Predicated region
    $region34: #{tpu_custom_call.1} parent=1 // pred_check
      _
    $region35: #{tpu_custom_call.1} parent=1 // pred_check_branch
      %57 = sbr.rel (0) target = $region37
    $region36: #{tpu_custom_call.1} parent=1 // pred_region
      _
    $region37: #{tpu_custom_call.1} parent=1 // pred_fallthru
      _
    // Predicated region
    $region38: #{tpu_custom_call.1} parent=1 // pred_check
      _
    $region39: #{tpu_custom_call.1} parent=1 // pred_check_branch
      %59 = sbr.rel (0) target = $region41
    $region40: #{tpu_custom_call.1} parent=1 // pred_region
      _
    $region41: #{tpu_custom_call.1} parent=1 // pred_fallthru
      _
    // Predicated region
    $region42: #{tpu_custom_call.1} parent=1 // pred_check
      _
    $region43: #{tpu_custom_call.1} parent=1 // pred_check_branch
      %61 = sbr.rel (0) target = $region45
    $region44: #{tpu_custom_call.1} parent=1 // pred_region
      _
    $region45: #{tpu_custom_call.1} parent=1 // pred_fallthru
      _
    // Predicated region
    $region46: #{tpu_custom_call.1} parent=1 // pred_check
      _
    $region47: #{tpu_custom_call.1} parent=1 // pred_check_branch
      %63 = sbr.rel (0) target = $region49
    $region48: #{tpu_custom_call.1} parent=1 // pred_region
      %65 = dma.done [#allocation3], 16384
    $region49: #{tpu_custom_call.1} parent=1 // pred_fallthru
      _
    // Predicated region
    $region50: #{tpu_custom_call.1} parent=1 // pred_check
      _
    $region51: #{tpu_custom_call.1} parent=1 // pred_check_branch
      %67 = sbr.rel (0) target = $region53
    $region52: #{tpu_custom_call.1} parent=1 // pred_region
      %69 = dma.done [#allocation5], 16384
    $region53: #{tpu_custom_call.1} parent=1 // pred_fallthru
      _
    %v71 = vld [vmem:[%s0] sm:$0xff]
    %v72 = vld [vmem:[%s0 + $0x8] sm:$0xff]
    %v73 = vld [vmem:[%s0 + $0x10] sm:$0xff]
    %v74 = vld [vmem:[%s0 + $0x18] sm:$0xff]
    %v75 = vld [vmem:[%s1] sm:$0xff]
    %v76 = vpack.c.bf16 %v71, %v71
    %v77 = vpack.c.bf16 %v72, %v72
    %v78 = vpack.c.bf16 %v73, %v73
    %v79 = vpack.c.bf16 %v74, %v74
    %v80 = vld [vmem:[#allocation2] sm:$0xff]
    %v81 = vld [vmem:[#allocation2 + $0x8] sm:$0xff]
    %v82 = vld [vmem:[#allocation2 + $0x10] sm:$0xff]
    %v83 = vld [vmem:[#allocation2 + $0x18] sm:$0xff]
    %v84 = vld [vmem:[#allocation2 + $0x20] sm:$0xff]
    %v85 = vld [vmem:[#allocation2 + $0x28] sm:$0xff]
    %v86 = vld [vmem:[#allocation2 + $0x30] sm:$0xff]
    %v87 = vld [vmem:[#allocation2 + $0x38] sm:$0xff]
    %v88 = vld [vmem:[#allocation2 + $0x40] sm:$0xff]
    %v89 = vld [vmem:[#allocation2 + $0x48] sm:$0xff]
    %v90 = vld [vmem:[#allocation2 + $0x50] sm:$0xff]
    %v91 = vld [vmem:[#allocation2 + $0x58] sm:$0xff]
    %v92 = vld [vmem:[#allocation2 + $0x60] sm:$0xff]
    %v93 = vld [vmem:[#allocation2 + $0x68] sm:$0xff]
    %v94 = vld [vmem:[#allocation2 + $0x70] sm:$0xff]
    %v95 = vld [vmem:[#allocation2 + $0x78] sm:$0xff]
    %v96 = vld [vmem:[#allocation2 + $0x80] sm:$0xff]
    %v97 = vld [vmem:[#allocation2 + $0x88] sm:$0xff]
    %v98 = vld [vmem:[#allocation2 + $0x90] sm:$0xff]
    %v99 = vld [vmem:[#allocation2 + $0x98] sm:$0xff]
    %v100 = vld [vmem:[#allocation2 + $0xa0] sm:$0xff]
    %v101 = vld [vmem:[#allocation2 + $0xa8] sm:$0xff]
    %v102 = vld [vmem:[#allocation2 + $0xb0] sm:$0xff]
    %v103 = vld [vmem:[#allocation2 + $0xb8] sm:$0xff]
    %v104 = vld [vmem:[#allocation2 + $0xc0] sm:$0xff]
    %v105 = vld [vmem:[#allocation2 + $0xc8] sm:$0xff]
    %v106 = vld [vmem:[#allocation2 + $0xd0] sm:$0xff]
    %v107 = vld [vmem:[#allocation2 + $0xd8] sm:$0xff]
    %v108 = vld [vmem:[#allocation2 + $0xe0] sm:$0xff]
    %v109 = vld [vmem:[#allocation2 + $0xe8] sm:$0xff]
    %v110 = vld [vmem:[#allocation2 + $0xf0] sm:$0xff]
    %v111 = vld [vmem:[#allocation2 + $0xf8] sm:$0xff]
    %v112 = vld [vmem:[#allocation2 + $0x100] sm:$0xff]
    %v113 = vld [vmem:[#allocation2 + $0x108] sm:$0xff]
    %v114 = vld [vmem:[#allocation2 + $0x110] sm:$0xff]
    %v115 = vld [vmem:[#allocation2 + $0x118] sm:$0xff]
    %v116 = vld [vmem:[#allocation2 + $0x120] sm:$0xff]
    %v117 = vld [vmem:[#allocation2 + $0x128] sm:$0xff]
    %v118 = vld [vmem:[#allocation2 + $0x130] sm:$0xff]
    %v119 = vld [vmem:[#allocation2 + $0x138] sm:$0xff]
    %v120 = vld [vmem:[#allocation2 + $0x140] sm:$0xff]
    %v121 = vld [vmem:[#allocation2 + $0x148] sm:$0xff]
    %v122 = vld [vmem:[#allocation2 + $0x150] sm:$0xff]
    %v123 = vld [vmem:[#allocation2 + $0x158] sm:$0xff]
    %v124 = vld [vmem:[#allocation2 + $0x160] sm:$0xff]
    %v125 = vld [vmem:[#allocation2 + $0x168] sm:$0xff]
    %v126 = vld [vmem:[#allocation2 + $0x170] sm:$0xff]
    %v127 = vld [vmem:[#allocation2 + $0x178] sm:$0xff]
    %v128 = vld [vmem:[#allocation2 + $0x180] sm:$0xff]
    %v129 = vld [vmem:[#allocation2 + $0x188] sm:$0xff]
    %v130 = vld [vmem:[#allocation2 + $0x190] sm:$0xff]
    %v131 = vld [vmem:[#allocation2 + $0x198] sm:$0xff]
    %v132 = vld [vmem:[#allocation2 + $0x1a0] sm:$0xff]
    %v133 = vld [vmem:[#allocation2 + $0x1a8] sm:$0xff]
    %v134 = vld [vmem:[#allocation2 + $0x1b0] sm:$0xff]
    %v135 = vld [vmem:[#allocation2 + $0x1b8] sm:$0xff]
    %v136 = vld [vmem:[#allocation2 + $0x1c0] sm:$0xff]
    %v137 = vld [vmem:[#allocation2 + $0x1c8] sm:$0xff]
    %v138 = vld [vmem:[#allocation2 + $0x1d0] sm:$0xff]
    %v139 = vld [vmem:[#allocation2 + $0x1d8] sm:$0xff]
    %v140 = vld [vmem:[#allocation2 + $0x1e0] sm:$0xff]
    %v141 = vld [vmem:[#allocation2 + $0x1e8] sm:$0xff]
    %v142 = vld [vmem:[#allocation2 + $0x1f0] sm:$0xff]
    %v143 = vld [vmem:[#allocation2 + $0x1f8] sm:$0xff]
    %v144 = vld [vmem:[#allocation2 + $0x200] sm:$0xff]
    %v145 = vld [vmem:[#allocation2 + $0x208] sm:$0xff]
    %v146 = vld [vmem:[#allocation2 + $0x210] sm:$0xff]
    %v147 = vld [vmem:[#allocation2 + $0x218] sm:$0xff]
    %v148 = vld [vmem:[#allocation2 + $0x220] sm:$0xff]
    %v149 = vld [vmem:[#allocation2 + $0x228] sm:$0xff]
    %v150 = vld [vmem:[#allocation2 + $0x230] sm:$0xff]
    %v151 = vld [vmem:[#allocation2 + $0x238] sm:$0xff]
    %v152 = vld [vmem:[#allocation2 + $0x240] sm:$0xff]
    %v153 = vld [vmem:[#allocation2 + $0x248] sm:$0xff]
    %v154 = vld [vmem:[#allocation2 + $0x250] sm:$0xff]
    %v155 = vld [vmem:[#allocation2 + $0x258] sm:$0xff]
    %v156 = vld [vmem:[#allocation2 + $0x260] sm:$0xff]
    %v157 = vld [vmem:[#allocation2 + $0x268] sm:$0xff]
    %v158 = vld [vmem:[#allocation2 + $0x270] sm:$0xff]
    %v159 = vld [vmem:[#allocation2 + $0x278] sm:$0xff]
    %v160 = vld [vmem:[#allocation2 + $0x280] sm:$0xff]
    %v161 = vld [vmem:[#allocation2 + $0x288] sm:$0xff]
    %v162 = vld [vmem:[#allocation2 + $0x290] sm:$0xff]
    %v163 = vld [vmem:[#allocation2 + $0x298] sm:$0xff]
    %v164 = vld [vmem:[#allocation2 + $0x2a0] sm:$0xff]
    %v165 = vld [vmem:[#allocation2 + $0x2a8] sm:$0xff]
    %v166 = vld [vmem:[#allocation2 + $0x2b0] sm:$0xff]
    %v167 = vld [vmem:[#allocation2 + $0x2b8] sm:$0xff]
    %v168 = vld [vmem:[#allocation2 + $0x2c0] sm:$0xff]
    %v169 = vld [vmem:[#allocation2 + $0x2c8] sm:$0xff]
    %v170 = vld [vmem:[#allocation2 + $0x2d0] sm:$0xff]
    %v171 = vld [vmem:[#allocation2 + $0x2d8] sm:$0xff]
    %v172 = vld [vmem:[#allocation2 + $0x2e0] sm:$0xff]
    %v173 = vld [vmem:[#allocation2 + $0x2e8] sm:$0xff]
    %v174 = vld [vmem:[#allocation2 + $0x2f0] sm:$0xff]
    %v175 = vld [vmem:[#allocation2 + $0x2f8] sm:$0xff]
    %v176 = vld [vmem:[#allocation2 + $0x300] sm:$0xff]
    %v177 = vld [vmem:[#allocation2 + $0x308] sm:$0xff]
    %v178 = vld [vmem:[#allocation2 + $0x310] sm:$0xff]
    %v179 = vld [vmem:[#allocation2 + $0x318] sm:$0xff]
    %v180 = vld [vmem:[#allocation2 + $0x320] sm:$0xff]
    %v181 = vld [vmem:[#allocation2 + $0x328] sm:$0xff]
    %v182 = vld [vmem:[#allocation2 + $0x330] sm:$0xff]
    %v183 = vld [vmem:[#allocation2 + $0x338] sm:$0xff]
    %v184 = vld [vmem:[#allocation2 + $0x340] sm:$0xff]
    %v185 = vld [vmem:[#allocation2 + $0x348] sm:$0xff]
    %v186 = vld [vmem:[#allocation2 + $0x350] sm:$0xff]
    %v187 = vld [vmem:[#allocation2 + $0x358] sm:$0xff]
    %v188 = vld [vmem:[#allocation2 + $0x360] sm:$0xff]
    %v189 = vld [vmem:[#allocation2 + $0x368] sm:$0xff]
    %v190 = vld [vmem:[#allocation2 + $0x370] sm:$0xff]
    %v191 = vld [vmem:[#allocation2 + $0x378] sm:$0xff]
    %v192 = vld [vmem:[#allocation2 + $0x380] sm:$0xff]
    %v193 = vld [vmem:[#allocation2 + $0x388] sm:$0xff]
    %v194 = vld [vmem:[#allocation2 + $0x390] sm:$0xff]
    %v195 = vld [vmem:[#allocation2 + $0x398] sm:$0xff]
    %v196 = vld [vmem:[#allocation2 + $0x3a0] sm:$0xff]
    %v197 = vld [vmem:[#allocation2 + $0x3a8] sm:$0xff]
    %v198 = vld [vmem:[#allocation2 + $0x3b0] sm:$0xff]
    %v199 = vld [vmem:[#allocation2 + $0x3b8] sm:$0xff]
    %v200 = vld [vmem:[#allocation2 + $0x3c0] sm:$0xff]
    %v201 = vld [vmem:[#allocation2 + $0x3c8] sm:$0xff]
    %v202 = vld [vmem:[#allocation2 + $0x3d0] sm:$0xff]
    %v203 = vld [vmem:[#allocation2 + $0x3d8] sm:$0xff]
    %v204 = vld [vmem:[#allocation2 + $0x3e0] sm:$0xff]
    %v205 = vld [vmem:[#allocation2 + $0x3e8] sm:$0xff]
    %v206 = vld [vmem:[#allocation2 + $0x3f0] sm:$0xff]
    %v207 = vld [vmem:[#allocation2 + $0x3f8] sm:$0xff]
    %v208 = vld [vmem:[%s2] sm:$0xf]
    %v210 = vperm.slane %v208, 0
    %v211 = vperm.slane %v208, 1
    %v212 = vperm.slane %v208, 2
    %v213 = vperm.slane %v208, 3
    %v346 = vunpack.c.l.b16 %v80
    %v347 = vunpack.c.h.b16 %v80
    %v348 = vunpack.c.l.b16 %v81
    %v349 = vunpack.c.h.b16 %v81
    %v350 = vunpack.c.l.b16 %v82
    %v351 = vunpack.c.h.b16 %v82
    %v352 = vunpack.c.l.b16 %v83
    %v353 = vunpack.c.h.b16 %v83
    %v354 = vunpack.c.l.b16 %v84
    %v355 = vunpack.c.h.b16 %v84
    %v356 = vunpack.c.l.b16 %v85
    %v357 = vunpack.c.h.b16 %v85
    %v358 = vunpack.c.l.b16 %v86
    %v359 = vunpack.c.h.b16 %v86
    %v360 = vunpack.c.l.b16 %v87
    %v361 = vunpack.c.h.b16 %v87
    %v362 = vunpack.c.l.b16 %v88
    %v363 = vunpack.c.h.b16 %v88
    %v364 = vunpack.c.l.b16 %v89
    %v365 = vunpack.c.h.b16 %v89
    %v366 = vunpack.c.l.b16 %v90
    %v367 = vunpack.c.h.b16 %v90
    %v368 = vunpack.c.l.b16 %v91
    %v369 = vunpack.c.h.b16 %v91
    %v370 = vunpack.c.l.b16 %v92
    %v371 = vunpack.c.h.b16 %v92
    %v372 = vunpack.c.l.b16 %v93
    %v373 = vunpack.c.h.b16 %v93
    %v374 = vunpack.c.l.b16 %v94
    %v375 = vunpack.c.h.b16 %v94
    %v376 = vunpack.c.l.b16 %v95
    %v377 = vunpack.c.h.b16 %v95
    %v378 = vunpack.c.l.b16 %v96
    %v379 = vunpack.c.h.b16 %v96
    %v380 = vunpack.c.l.b16 %v97
    %v381 = vunpack.c.h.b16 %v97
    %v382 = vunpack.c.l.b16 %v98
    %v383 = vunpack.c.h.b16 %v98
    %v384 = vunpack.c.l.b16 %v99
    %v385 = vunpack.c.h.b16 %v99
    %v386 = vunpack.c.l.b16 %v100
    %v387 = vunpack.c.h.b16 %v100
    %v388 = vunpack.c.l.b16 %v101
    %v389 = vunpack.c.h.b16 %v101
    %v390 = vunpack.c.l.b16 %v102
    %v391 = vunpack.c.h.b16 %v102
    %v392 = vunpack.c.l.b16 %v103
    %v393 = vunpack.c.h.b16 %v103
    %v394 = vunpack.c.l.b16 %v104
    %v395 = vunpack.c.h.b16 %v104
    %v396 = vunpack.c.l.b16 %v105
    %v397 = vunpack.c.h.b16 %v105
    %v398 = vunpack.c.l.b16 %v106
    %v399 = vunpack.c.h.b16 %v106
    %v400 = vunpack.c.l.b16 %v107
    %v401 = vunpack.c.h.b16 %v107
    %v402 = vunpack.c.l.b16 %v108
    %v403 = vunpack.c.h.b16 %v108
    %v404 = vunpack.c.l.b16 %v109
    %v405 = vunpack.c.h.b16 %v109
    %v406 = vunpack.c.l.b16 %v110
    %v407 = vunpack.c.h.b16 %v110
    %v408 = vunpack.c.l.b16 %v111
    %v409 = vunpack.c.h.b16 %v111
    %v410 = vunpack.c.l.b16 %v112
    %v411 = vunpack.c.h.b16 %v112
    %v412 = vunpack.c.l.b16 %v113
    %v413 = vunpack.c.h.b16 %v113
    %v414 = vunpack.c.l.b16 %v114
    %v415 = vunpack.c.h.b16 %v114
    %v416 = vunpack.c.l.b16 %v115
    %v417 = vunpack.c.h.b16 %v115
    %v418 = vunpack.c.l.b16 %v116
    %v419 = vunpack.c.h.b16 %v116
    %v420 = vunpack.c.l.b16 %v117
    %v421 = vunpack.c.h.b16 %v117
    %v422 = vunpack.c.l.b16 %v118
    %v423 = vunpack.c.h.b16 %v118
    %v424 = vunpack.c.l.b16 %v119
    %v425 = vunpack.c.h.b16 %v119
    %v426 = vunpack.c.l.b16 %v120
    %v427 = vunpack.c.h.b16 %v120
    %v428 = vunpack.c.l.b16 %v121
    %v429 = vunpack.c.h.b16 %v121
    %v430 = vunpack.c.l.b16 %v122
    %v431 = vunpack.c.h.b16 %v122
    %v432 = vunpack.c.l.b16 %v123
    %v433 = vunpack.c.h.b16 %v123
    %v434 = vunpack.c.l.b16 %v124
    %v435 = vunpack.c.h.b16 %v124
    %v436 = vunpack.c.l.b16 %v125
    %v437 = vunpack.c.h.b16 %v125
    %v438 = vunpack.c.l.b16 %v126
    %v439 = vunpack.c.h.b16 %v126
    %v440 = vunpack.c.l.b16 %v127
    %v441 = vunpack.c.h.b16 %v127
    %v442 = vunpack.c.l.b16 %v128
    %v443 = vunpack.c.h.b16 %v128
    %v444 = vunpack.c.l.b16 %v129
    %v445 = vunpack.c.h.b16 %v129
    %v446 = vunpack.c.l.b16 %v130
    %v447 = vunpack.c.h.b16 %v130
    %v448 = vunpack.c.l.b16 %v131
    %v449 = vunpack.c.h.b16 %v131
    %v450 = vunpack.c.l.b16 %v132
    %v451 = vunpack.c.h.b16 %v132
    %v452 = vunpack.c.l.b16 %v133
    %v453 = vunpack.c.h.b16 %v133
    %v454 = vunpack.c.l.b16 %v134
    %v455 = vunpack.c.h.b16 %v134
    %v456 = vunpack.c.l.b16 %v135
    %v457 = vunpack.c.h.b16 %v135
    %v458 = vunpack.c.l.b16 %v136
    %v459 = vunpack.c.h.b16 %v136
    %v460 = vunpack.c.l.b16 %v137
    %v461 = vunpack.c.h.b16 %v137
    %v462 = vunpack.c.l.b16 %v138
    %v463 = vunpack.c.h.b16 %v138
    %v464 = vunpack.c.l.b16 %v139
    %v465 = vunpack.c.h.b16 %v139
    %v466 = vunpack.c.l.b16 %v140
    %v467 = vunpack.c.h.b16 %v140
    %v468 = vunpack.c.l.b16 %v141
    %v469 = vunpack.c.h.b16 %v141
    %v470 = vunpack.c.l.b16 %v142
    %v471 = vunpack.c.h.b16 %v142
    %v472 = vunpack.c.l.b16 %v143
    %v473 = vunpack.c.h.b16 %v143
    %v474 = vunpack.c.l.b16 %v144
    %v475 = vunpack.c.h.b16 %v144
    %v476 = vunpack.c.l.b16 %v145
    %v477 = vunpack.c.h.b16 %v145
    %v478 = vunpack.c.l.b16 %v146
    %v479 = vunpack.c.h.b16 %v146
    %v480 = vunpack.c.l.b16 %v147
    %v481 = vunpack.c.h.b16 %v147
    %v482 = vunpack.c.l.b16 %v148
    %v483 = vunpack.c.h.b16 %v148
    %v484 = vunpack.c.l.b16 %v149
    %v485 = vunpack.c.h.b16 %v149
    %v486 = vunpack.c.l.b16 %v150
    %v487 = vunpack.c.h.b16 %v150
    %v488 = vunpack.c.l.b16 %v151
    %v489 = vunpack.c.h.b16 %v151
    %v490 = vunpack.c.l.b16 %v152
    %v491 = vunpack.c.h.b16 %v152
    %v492 = vunpack.c.l.b16 %v153
    %v493 = vunpack.c.h.b16 %v153
    %v494 = vunpack.c.l.b16 %v154
    %v495 = vunpack.c.h.b16 %v154
    %v496 = vunpack.c.l.b16 %v155
    %v497 = vunpack.c.h.b16 %v155
    %v498 = vunpack.c.l.b16 %v156
    %v499 = vunpack.c.h.b16 %v156
    %v500 = vunpack.c.l.b16 %v157
    %v501 = vunpack.c.h.b16 %v157
    %v502 = vunpack.c.l.b16 %v158
    %v503 = vunpack.c.h.b16 %v158
    %v504 = vunpack.c.l.b16 %v159
    %v505 = vunpack.c.h.b16 %v159
    %v506 = vunpack.c.l.b16 %v160
    %v507 = vunpack.c.h.b16 %v160
    %v508 = vunpack.c.l.b16 %v161
    %v509 = vunpack.c.h.b16 %v161
    %v510 = vunpack.c.l.b16 %v162
    %v511 = vunpack.c.h.b16 %v162
    %v512 = vunpack.c.l.b16 %v163
    %v513 = vunpack.c.h.b16 %v163
    %v514 = vunpack.c.l.b16 %v164
    %v515 = vunpack.c.h.b16 %v164
    %v516 = vunpack.c.l.b16 %v165
    %v517 = vunpack.c.h.b16 %v165
    %v518 = vunpack.c.l.b16 %v166
    %v519 = vunpack.c.h.b16 %v166
    %v520 = vunpack.c.l.b16 %v167
    %v521 = vunpack.c.h.b16 %v167
    %v522 = vunpack.c.l.b16 %v168
    %v523 = vunpack.c.h.b16 %v168
    %v524 = vunpack.c.l.b16 %v169
    %v525 = vunpack.c.h.b16 %v169
    %v526 = vunpack.c.l.b16 %v170
    %v527 = vunpack.c.h.b16 %v170
    %v528 = vunpack.c.l.b16 %v171
    %v529 = vunpack.c.h.b16 %v171
    %v530 = vunpack.c.l.b16 %v172
    %v531 = vunpack.c.h.b16 %v172
    %v532 = vunpack.c.l.b16 %v173
    %v533 = vunpack.c.h.b16 %v173
    %v534 = vunpack.c.l.b16 %v174
    %v535 = vunpack.c.h.b16 %v174
    %v536 = vunpack.c.l.b16 %v175
    %v537 = vunpack.c.h.b16 %v175
    %v538 = vunpack.c.l.b16 %v176
    %v539 = vunpack.c.h.b16 %v176
    %v540 = vunpack.c.l.b16 %v177
    %v541 = vunpack.c.h.b16 %v177
    %v542 = vunpack.c.l.b16 %v178
    %v543 = vunpack.c.h.b16 %v178
    %v544 = vunpack.c.l.b16 %v179
    %v545 = vunpack.c.h.b16 %v179
    %v546 = vunpack.c.l.b16 %v180
    %v547 = vunpack.c.h.b16 %v180
    %v548 = vunpack.c.l.b16 %v181
    %v549 = vunpack.c.h.b16 %v181
    %v550 = vunpack.c.l.b16 %v182
    %v551 = vunpack.c.h.b16 %v182
    %v552 = vunpack.c.l.b16 %v183
    %v553 = vunpack.c.h.b16 %v183
    %v554 = vunpack.c.l.b16 %v184
    %v555 = vunpack.c.h.b16 %v184
    %v556 = vunpack.c.l.b16 %v185
    %v557 = vunpack.c.h.b16 %v185
    %v558 = vunpack.c.l.b16 %v186
    %v559 = vunpack.c.h.b16 %v186
    %v560 = vunpack.c.l.b16 %v187
    %v561 = vunpack.c.h.b16 %v187
    %v562 = vunpack.c.l.b16 %v188
    %v563 = vunpack.c.h.b16 %v188
    %v564 = vunpack.c.l.b16 %v189
    %v565 = vunpack.c.h.b16 %v189
    %v566 = vunpack.c.l.b16 %v190
    %v567 = vunpack.c.h.b16 %v190
    %v568 = vunpack.c.l.b16 %v191
    %v569 = vunpack.c.h.b16 %v191
    %v570 = vunpack.c.l.b16 %v192
    %v571 = vunpack.c.h.b16 %v192
    %v572 = vunpack.c.l.b16 %v193
    %v573 = vunpack.c.h.b16 %v193
    %v574 = vunpack.c.l.b16 %v194
    %v575 = vunpack.c.h.b16 %v194
    %v576 = vunpack.c.l.b16 %v195
    %v577 = vunpack.c.h.b16 %v195
    %v578 = vunpack.c.l.b16 %v196
    %v579 = vunpack.c.h.b16 %v196
    %v580 = vunpack.c.l.b16 %v197
    %v581 = vunpack.c.h.b16 %v197
    %v582 = vunpack.c.l.b16 %v198
    %v583 = vunpack.c.h.b16 %v198
    %v584 = vunpack.c.l.b16 %v199
    %v585 = vunpack.c.h.b16 %v199
    %v586 = vunpack.c.l.b16 %v200
    %v587 = vunpack.c.h.b16 %v200
    %v588 = vunpack.c.l.b16 %v201
    %v589 = vunpack.c.h.b16 %v201
    %v590 = vunpack.c.l.b16 %v202
    %v591 = vunpack.c.h.b16 %v202
    %v592 = vunpack.c.l.b16 %v203
    %v593 = vunpack.c.h.b16 %v203
    %v594 = vunpack.c.l.b16 %v204
    %v595 = vunpack.c.h.b16 %v204
    %v596 = vunpack.c.l.b16 %v205
    %v597 = vunpack.c.h.b16 %v205
    %v598 = vunpack.c.l.b16 %v206
    %v599 = vunpack.c.h.b16 %v206
    %v600 = vunpack.c.l.b16 %v207
    %v601 = vunpack.c.h.b16 %v207
    %v602 = vpack.c.b16 %v350, %v346
    %v603 = vpack.c.b16 %v351, %v347
    %v604 = vpack.c.b16 %v352, %v348
    %v605 = vpack.c.b16 %v353, %v349
    %v606 = vpack.c.b16 %v358, %v354
    %v607 = vpack.c.b16 %v359, %v355
    %v608 = vpack.c.b16 %v360, %v356
    %v609 = vpack.c.b16 %v361, %v357
    %v610 = vpack.c.b16 %v366, %v362
    %v611 = vpack.c.b16 %v367, %v363
    %v612 = vpack.c.b16 %v368, %v364
    %v613 = vpack.c.b16 %v369, %v365
    %v614 = vpack.c.b16 %v374, %v370
    %v615 = vpack.c.b16 %v375, %v371
    %v616 = vpack.c.b16 %v376, %v372
    %v617 = vpack.c.b16 %v377, %v373
    %v618 = vpack.c.b16 %v382, %v378
    %v619 = vpack.c.b16 %v383, %v379
    %v620 = vpack.c.b16 %v384, %v380
    %v621 = vpack.c.b16 %v385, %v381
    %v622 = vpack.c.b16 %v390, %v386
    %v623 = vpack.c.b16 %v391, %v387
    %v624 = vpack.c.b16 %v392, %v388
    %v625 = vpack.c.b16 %v393, %v389
    %v626 = vpack.c.b16 %v398, %v394
    %v627 = vpack.c.b16 %v399, %v395
    %v628 = vpack.c.b16 %v400, %v396
    %v629 = vpack.c.b16 %v401, %v397
    %v630 = vpack.c.b16 %v406, %v402
    %v631 = vpack.c.b16 %v407, %v403
    %v632 = vpack.c.b16 %v408, %v404
    %v633 = vpack.c.b16 %v409, %v405
    %v634 = vpack.c.b16 %v414, %v410
    %v635 = vpack.c.b16 %v415, %v411
    %v636 = vpack.c.b16 %v416, %v412
    %v637 = vpack.c.b16 %v417, %v413
    %v638 = vpack.c.b16 %v422, %v418
    %v639 = vpack.c.b16 %v423, %v419
    %v640 = vpack.c.b16 %v424, %v420
    %v641 = vpack.c.b16 %v425, %v421
    %v642 = vpack.c.b16 %v430, %v426
    %v643 = vpack.c.b16 %v431, %v427
    %v644 = vpack.c.b16 %v432, %v428
    %v645 = vpack.c.b16 %v433, %v429
    %v646 = vpack.c.b16 %v438, %v434
    %v647 = vpack.c.b16 %v439, %v435
    %v648 = vpack.c.b16 %v440, %v436
    %v649 = vpack.c.b16 %v441, %v437
    %v650 = vpack.c.b16 %v446, %v442
    %v651 = vpack.c.b16 %v447, %v443
    %v652 = vpack.c.b16 %v448, %v444
    %v653 = vpack.c.b16 %v449, %v445
    %v654 = vpack.c.b16 %v454, %v450
    %v655 = vpack.c.b16 %v455, %v451
    %v656 = vpack.c.b16 %v456, %v452
    %v657 = vpack.c.b16 %v457, %v453
    %v658 = vpack.c.b16 %v462, %v458
    %v659 = vpack.c.b16 %v463, %v459
    %v660 = vpack.c.b16 %v464, %v460
    %v661 = vpack.c.b16 %v465, %v461
    %v662 = vpack.c.b16 %v470, %v466
    %v663 = vpack.c.b16 %v471, %v467
    %v664 = vpack.c.b16 %v472, %v468
    %v665 = vpack.c.b16 %v473, %v469
    %v666 = vpack.c.b16 %v478, %v474
    %v667 = vpack.c.b16 %v479, %v475
    %v668 = vpack.c.b16 %v480, %v476
    %v669 = vpack.c.b16 %v481, %v477
    %v670 = vpack.c.b16 %v486, %v482
    %v671 = vpack.c.b16 %v487, %v483
    %v672 = vpack.c.b16 %v488, %v484
    %v673 = vpack.c.b16 %v489, %v485
    %v674 = vpack.c.b16 %v494, %v490
    %v675 = vpack.c.b16 %v495, %v491
    %v676 = vpack.c.b16 %v496, %v492
    %v677 = vpack.c.b16 %v497, %v493
    %v678 = vpack.c.b16 %v502, %v498
    %v679 = vpack.c.b16 %v503, %v499
    %v680 = vpack.c.b16 %v504, %v500
    %v681 = vpack.c.b16 %v505, %v501
    %v682 = vpack.c.b16 %v510, %v506
    %v683 = vpack.c.b16 %v511, %v507
    %v684 = vpack.c.b16 %v512, %v508
    %v685 = vpack.c.b16 %v513, %v509
    %v686 = vpack.c.b16 %v518, %v514
    %v687 = vpack.c.b16 %v519, %v515
    %v688 = vpack.c.b16 %v520, %v516
    %v689 = vpack.c.b16 %v521, %v517
    %v690 = vpack.c.b16 %v526, %v522
    %v691 = vpack.c.b16 %v527, %v523
    %v692 = vpack.c.b16 %v528, %v524
    %v693 = vpack.c.b16 %v529, %v525
    %v694 = vpack.c.b16 %v534, %v530
    %v695 = vpack.c.b16 %v535, %v531
    %v696 = vpack.c.b16 %v536, %v532
    %v697 = vpack.c.b16 %v537, %v533
    %v698 = vpack.c.b16 %v542, %v538
    %v699 = vpack.c.b16 %v543, %v539
    %v700 = vpack.c.b16 %v544, %v540
    %v701 = vpack.c.b16 %v545, %v541
    %v702 = vpack.c.b16 %v550, %v546
    %v703 = vpack.c.b16 %v551, %v547
    %v704 = vpack.c.b16 %v552, %v548
    %v705 = vpack.c.b16 %v553, %v549
    %v706 = vpack.c.b16 %v558, %v554
    %v707 = vpack.c.b16 %v559, %v555
    %v708 = vpack.c.b16 %v560, %v556
    %v709 = vpack.c.b16 %v561, %v557
    %v710 = vpack.c.b16 %v566, %v562
    %v711 = vpack.c.b16 %v567, %v563
    %v712 = vpack.c.b16 %v568, %v564
    %v713 = vpack.c.b16 %v569, %v565
    %v714 = vpack.c.b16 %v574, %v570
    %v715 = vpack.c.b16 %v575, %v571
    %v716 = vpack.c.b16 %v576, %v572
    %v717 = vpack.c.b16 %v577, %v573
    %v718 = vpack.c.b16 %v582, %v578
    %v719 = vpack.c.b16 %v583, %v579
    %v720 = vpack.c.b16 %v584, %v580
    %v721 = vpack.c.b16 %v585, %v581
    %v722 = vpack.c.b16 %v590, %v586
    %v723 = vpack.c.b16 %v591, %v587
    %v724 = vpack.c.b16 %v592, %v588
    %v725 = vpack.c.b16 %v593, %v589
    %v726 = vpack.c.b16 %v598, %v594
    %v727 = vpack.c.b16 %v599, %v595
    %v728 = vpack.c.b16 %v600, %v596
    %v729 = vpack.c.b16 %v601, %v597
    %858 = vmatpush.bf16.msra.mxu0 %v630
    %859 = vmatpush.bf16.msra.mxu0 %v626
    %860 = vmatpush.bf16.msra.mxu0 %v622
    %861 = vmatpush.bf16.msra.mxu0 %v618
    %862 = vmatpush.bf16.msra.mxu0 %v614
    %863 = vmatpush.bf16.msra.mxu0 %v610
    %864 = vmatpush.bf16.msra.mxu0 %v606
    %865 = vmatpush.bf16.msra.mxu0 %v602
    %866 = vmatmul.bf16.gmra.mxu0 %v76
    %v867 = vpop.f32.mrf.mxu0
    %v868 = vadd.f32 %v210, %v867
    %v869 = vpop.f32.mrf.mxu0
    %870 = vdwg.mxu0
    %871 = vmatpush.bf16.msra.mxu0 %v662
    %872 = vmatpush.bf16.msra.mxu0 %v658
    %873 = vmatpush.bf16.msra.mxu0 %v654
    %874 = vmatpush.bf16.msra.mxu0 %v650
    %875 = vmatpush.bf16.msra.mxu0 %v646
    %876 = vmatpush.bf16.msra.mxu0 %v642
    %877 = vmatpush.bf16.msra.mxu0 %v638
    %878 = vmatpush.bf16.msra.mxu0 %v634
    %879 = vmatmul.bf16.gmra.mxu0 %v77
    %v880 = vpop.f32.mrf.mxu0
    %v881 = vadd.f32 %v868, %v880
    %v882 = vpop.f32.mrf.mxu0
    %883 = vdwg.mxu0
    %884 = vmatpush.bf16.msra.mxu0 %v694
    %885 = vmatpush.bf16.msra.mxu0 %v690
    %886 = vmatpush.bf16.msra.mxu0 %v686
    %887 = vmatpush.bf16.msra.mxu0 %v682
    %888 = vmatpush.bf16.msra.mxu0 %v678
    %889 = vmatpush.bf16.msra.mxu0 %v674
    %890 = vmatpush.bf16.msra.mxu0 %v670
    %891 = vmatpush.bf16.msra.mxu0 %v666
    %892 = vmatmul.bf16.gmra.mxu0 %v78
    %v893 = vpop.f32.mrf.mxu0
    %v894 = vadd.f32 %v881, %v893
    %v895 = vpop.f32.mrf.mxu0
    %896 = vdwg.mxu0
    %897 = vmatpush.bf16.msra.mxu0 %v726
    %898 = vmatpush.bf16.msra.mxu0 %v722
    %899 = vmatpush.bf16.msra.mxu0 %v718
    %900 = vmatpush.bf16.msra.mxu0 %v714
    %901 = vmatpush.bf16.msra.mxu0 %v710
    %902 = vmatpush.bf16.msra.mxu0 %v706
    %903 = vmatpush.bf16.msra.mxu0 %v702
    %904 = vmatpush.bf16.msra.mxu0 %v698
    %905 = vmatmul.bf16.gmra.mxu0 %v79
    %v906 = vpop.f32.mrf.mxu0
    %v907 = vadd.f32 %v894, %v906
    %v908 = vpop.f32.mrf.mxu0
    %909 = vdwg.mxu0
    %910 = vmatpush.bf16.msra.mxu0 %v631
    %911 = vmatpush.bf16.msra.mxu0 %v627
    %912 = vmatpush.bf16.msra.mxu0 %v623
    %913 = vmatpush.bf16.msra.mxu0 %v619
    %914 = vmatpush.bf16.msra.mxu0 %v615
    %915 = vmatpush.bf16.msra.mxu0 %v611
    %916 = vmatpush.bf16.msra.mxu0 %v607
    %917 = vmatpush.bf16.msra.mxu0 %v603
    %918 = vmatmul.bf16.gmra.mxu0 %v76
    %v919 = vpop.f32.mrf.mxu0
    %v920 = vadd.f32 %v211, %v919
    %v921 = vpop.f32.mrf.mxu0
    %922 = vdwg.mxu0
    %923 = vmatpush.bf16.msra.mxu0 %v663
    %924 = vmatpush.bf16.msra.mxu0 %v659
    %925 = vmatpush.bf16.msra.mxu0 %v655
    %926 = vmatpush.bf16.msra.mxu0 %v651
    %927 = vmatpush.bf16.msra.mxu0 %v647
    %928 = vmatpush.bf16.msra.mxu0 %v643
    %929 = vmatpush.bf16.msra.mxu0 %v639
    %930 = vmatpush.bf16.msra.mxu0 %v635
    %931 = vmatmul.bf16.gmra.mxu0 %v77
    %v932 = vpop.f32.mrf.mxu0
    %v933 = vadd.f32 %v920, %v932
    %v934 = vpop.f32.mrf.mxu0
    %935 = vdwg.mxu0
    %936 = vmatpush.bf16.msra.mxu0 %v695
    %937 = vmatpush.bf16.msra.mxu0 %v691
    %938 = vmatpush.bf16.msra.mxu0 %v687
    %939 = vmatpush.bf16.msra.mxu0 %v683
    %940 = vmatpush.bf16.msra.mxu0 %v679
    %941 = vmatpush.bf16.msra.mxu0 %v675
    %942 = vmatpush.bf16.msra.mxu0 %v671
    %943 = vmatpush.bf16.msra.mxu0 %v667
    %944 = vmatmul.bf16.gmra.mxu0 %v78
    %v945 = vpop.f32.mrf.mxu0
    %v946 = vadd.f32 %v933, %v945
    %v947 = vpop.f32.mrf.mxu0
    %948 = vdwg.mxu0
    %949 = vmatpush.bf16.msra.mxu0 %v727
    %950 = vmatpush.bf16.msra.mxu0 %v723
    %951 = vmatpush.bf16.msra.mxu0 %v719
    %952 = vmatpush.bf16.msra.mxu0 %v715
    %953 = vmatpush.bf16.msra.mxu0 %v711
    %954 = vmatpush.bf16.msra.mxu0 %v707
    %955 = vmatpush.bf16.msra.mxu0 %v703
    %956 = vmatpush.bf16.msra.mxu0 %v699
    %957 = vmatmul.bf16.gmra.mxu0 %v79
    %v958 = vpop.f32.mrf.mxu0
    %v959 = vadd.f32 %v946, %v958
    %v960 = vpop.f32.mrf.mxu0
    %961 = vdwg.mxu0
    %962 = vmatpush.bf16.msra.mxu0 %v632
    %963 = vmatpush.bf16.msra.mxu0 %v628
    %964 = vmatpush.bf16.msra.mxu0 %v624
    %965 = vmatpush.bf16.msra.mxu0 %v620
    %966 = vmatpush.bf16.msra.mxu0 %v616
    %967 = vmatpush.bf16.msra.mxu0 %v612
    %968 = vmatpush.bf16.msra.mxu0 %v608
    %969 = vmatpush.bf16.msra.mxu0 %v604
    %970 = vmatmul.bf16.gmra.mxu0 %v76
    %v971 = vpop.f32.mrf.mxu0
    %v972 = vadd.f32 %v212, %v971
    %v973 = vpop.f32.mrf.mxu0
    %974 = vdwg.mxu0
    %975 = vmatpush.bf16.msra.mxu0 %v664
    %976 = vmatpush.bf16.msra.mxu0 %v660
    %977 = vmatpush.bf16.msra.mxu0 %v656
    %978 = vmatpush.bf16.msra.mxu0 %v652
    %979 = vmatpush.bf16.msra.mxu0 %v648
    %980 = vmatpush.bf16.msra.mxu0 %v644
    %981 = vmatpush.bf16.msra.mxu0 %v640
    %982 = vmatpush.bf16.msra.mxu0 %v636
    %983 = vmatmul.bf16.gmra.mxu0 %v77
    %v984 = vpop.f32.mrf.mxu0
    %v985 = vadd.f32 %v972, %v984
    %v986 = vpop.f32.mrf.mxu0
    %987 = vdwg.mxu0
    %988 = vmatpush.bf16.msra.mxu0 %v696
    %989 = vmatpush.bf16.msra.mxu0 %v692
    %990 = vmatpush.bf16.msra.mxu0 %v688
    %991 = vmatpush.bf16.msra.mxu0 %v684
    %992 = vmatpush.bf16.msra.mxu0 %v680
    %993 = vmatpush.bf16.msra.mxu0 %v676
    %994 = vmatpush.bf16.msra.mxu0 %v672
    %995 = vmatpush.bf16.msra.mxu0 %v668
    %996 = vmatmul.bf16.gmra.mxu0 %v78
    %v997 = vpop.f32.mrf.mxu0
    %v998 = vadd.f32 %v985, %v997
    %v999 = vpop.f32.mrf.mxu0
    %1000 = vdwg.mxu0
    %1001 = vmatpush.bf16.msra.mxu0 %v728
    %1002 = vmatpush.bf16.msra.mxu0 %v724
    %1003 = vmatpush.bf16.msra.mxu0 %v720
    %1004 = vmatpush.bf16.msra.mxu0 %v716
    %1005 = vmatpush.bf16.msra.mxu0 %v712
    %1006 = vmatpush.bf16.msra.mxu0 %v708
    %1007 = vmatpush.bf16.msra.mxu0 %v704
    %1008 = vmatpush.bf16.msra.mxu0 %v700
    %1009 = vmatmul.bf16.gmra.mxu0 %v79
    %v1010 = vpop.f32.mrf.mxu0
    %v1011 = vadd.f32 %v998, %v1010
    %v1012 = vpop.f32.mrf.mxu0
    %1013 = vdwg.mxu0
    %1014 = vmatpush.bf16.msra.mxu0 %v633
    %1015 = vmatpush.bf16.msra.mxu0 %v629
    %1016 = vmatpush.bf16.msra.mxu0 %v625
    %1017 = vmatpush.bf16.msra.mxu0 %v621
    %1018 = vmatpush.bf16.msra.mxu0 %v617
    %1019 = vmatpush.bf16.msra.mxu0 %v613
    %1020 = vmatpush.bf16.msra.mxu0 %v609
    %1021 = vmatpush.bf16.msra.mxu0 %v605
    %1022 = vmatmul.bf16.gmra.mxu0 %v76
    %v1023 = vpop.f32.mrf.mxu0
    %v1024 = vadd.f32 %v213, %v1023
    %v1025 = vpop.f32.mrf.mxu0
    %1026 = vdwg.mxu0
    %1027 = vmatpush.bf16.msra.mxu0 %v665
    %1028 = vmatpush.bf16.msra.mxu0 %v661
    %1029 = vmatpush.bf16.msra.mxu0 %v657
    %1030 = vmatpush.bf16.msra.mxu0 %v653
    %1031 = vmatpush.bf16.msra.mxu0 %v649
    %1032 = vmatpush.bf16.msra.mxu0 %v645
    %1033 = vmatpush.bf16.msra.mxu0 %v641
    %1034 = vmatpush.bf16.msra.mxu0 %v637
    %1035 = vmatmul.bf16.gmra.mxu0 %v77
    %v1036 = vpop.f32.mrf.mxu0
    %v1037 = vadd.f32 %v1024, %v1036
    %v1038 = vpop.f32.mrf.mxu0
    %1039 = vdwg.mxu0
    %1040 = vmatpush.bf16.msra.mxu0 %v697
    %1041 = vmatpush.bf16.msra.mxu0 %v693
    %1042 = vmatpush.bf16.msra.mxu0 %v689
    %1043 = vmatpush.bf16.msra.mxu0 %v685
    %1044 = vmatpush.bf16.msra.mxu0 %v681
    %1045 = vmatpush.bf16.msra.mxu0 %v677
    %1046 = vmatpush.bf16.msra.mxu0 %v673
    %1047 = vmatpush.bf16.msra.mxu0 %v669
    %1048 = vmatmul.bf16.gmra.mxu0 %v78
    %v1049 = vpop.f32.mrf.mxu0
    %v1050 = vadd.f32 %v1037, %v1049
    %v1051 = vpop.f32.mrf.mxu0
    %1052 = vdwg.mxu0
    %1053 = vmatpush.bf16.msra.mxu0 %v729
    %1054 = vmatpush.bf16.msra.mxu0 %v725
    %1055 = vmatpush.bf16.msra.mxu0 %v721
    %1056 = vmatpush.bf16.msra.mxu0 %v717
    %1057 = vmatpush.bf16.msra.mxu0 %v713
    %1058 = vmatpush.bf16.msra.mxu0 %v709
    %1059 = vmatpush.bf16.msra.mxu0 %v705
    %1060 = vmatpush.bf16.msra.mxu0 %v701
    %1061 = vmatmul.bf16.gmra.mxu0 %v79
    %v1062 = vpop.f32.mrf.mxu0
    %v1063 = vadd.f32 %v1050, %v1062
    %v1064 = vpop.f32.mrf.mxu0
    %1065 = vdwg.mxu0
    %v1066 = vrot.slane %v907, 4
    %v1067 = vadd.f32 %v907, %v1066
    %v1068 = vrot.slane %v1067, 2
    %v1069 = vadd.f32 %v1067, %v1068
    %v1070 = vrot.slane %v1069, 1
    %v1071 = vadd.f32 %v1069, %v1070
    %v1072 = vrot.slane %v959, 4
    %v1073 = vadd.f32 %v959, %v1072
    %v1074 = vrot.slane %v1073, 2
    %v1075 = vadd.f32 %v1073, %v1074
    %v1076 = vrot.slane %v1075, 1
    %v1077 = vadd.f32 %v1075, %v1076
    %v1078 = vrot.slane %v1011, 4
    %v1079 = vadd.f32 %v1011, %v1078
    %v1080 = vrot.slane %v1079, 2
    %v1081 = vadd.f32 %v1079, %v1080
    %v1082 = vrot.slane %v1081, 1
    %v1083 = vadd.f32 %v1081, %v1082
    %v1084 = vrot.slane %v1063, 4
    %v1085 = vadd.f32 %v1063, %v1084
    %v1086 = vrot.slane %v1085, 2
    %v1087 = vadd.f32 %v1085, %v1086
    %v1088 = vrot.slane %v1087, 1
    %v1089 = vadd.f32 %v1087, %v1088
    %v1090 = vmul.f32 %v1071, 0.125
    %v1091 = vmul.f32 %v1077, 0.125
    %v1092 = vmul.f32 %v1083, 0.125
    %v1093 = vmul.f32 %v1089, 0.125
    %v1094 = vmul.f32 %v907, %v907
    %v1095 = vmul.f32 %v959, %v959
    %v1096 = vmul.f32 %v1011, %v1011
    %v1097 = vmul.f32 %v1063, %v1063
    %v1098 = vrot.slane %v1094, 4
    %v1099 = vadd.f32 %v1094, %v1098
    %v1100 = vrot.slane %v1099, 2
    %v1101 = vadd.f32 %v1099, %v1100
    %v1102 = vrot.slane %v1101, 1
    %v1103 = vadd.f32 %v1101, %v1102
    %v1104 = vrot.slane %v1095, 4
    %v1105 = vadd.f32 %v1095, %v1104
    %v1106 = vrot.slane %v1105, 2
    %v1107 = vadd.f32 %v1105, %v1106
    %v1108 = vrot.slane %v1107, 1
    %v1109 = vadd.f32 %v1107, %v1108
    %v1110 = vrot.slane %v1096, 4
    %v1111 = vadd.f32 %v1096, %v1110
    %v1112 = vrot.slane %v1111, 2
    %v1113 = vadd.f32 %v1111, %v1112
    %v1114 = vrot.slane %v1113, 1
    %v1115 = vadd.f32 %v1113, %v1114
    %v1116 = vrot.slane %v1097, 4
    %v1117 = vadd.f32 %v1097, %v1116
    %v1118 = vrot.slane %v1117, 2
    %v1119 = vadd.f32 %v1117, %v1118
    %v1120 = vrot.slane %v1119, 1
    %v1121 = vadd.f32 %v1119, %v1120
    %v1122 = vmul.f32 %v1103, 0.125
    %v1123 = vmul.f32 %v1109, 0.125
    %v1124 = vmul.f32 %v1115, 0.125
    %v1125 = vmul.f32 %v1121, 0.125
    %v1126 = vmul.f32 %v1090, %v1090
    %v1127 = vmul.f32 %v1091, %v1091
    %v1128 = vmul.f32 %v1092, %v1092
    %v1129 = vmul.f32 %v1093, %v1093
    %v1130 = vsub.f32 %v1122, %v1126
    %v1131 = vsub.f32 %v1123, %v1127
    %v1132 = vsub.f32 %v1124, %v1128
    %v1133 = vsub.f32 %v1125, %v1129
    %v1134 = vmax.f32 %v1130, 0.0
    %v1135 = vmax.f32 %v1131, 0.0
    %v1136 = vmax.f32 %v1132, 0.0
    %v1137 = vmax.f32 %v1133, 0.0
    %v1138 = vsub.f32 %v907, %v1090
    %v1139 = vsub.f32 %v959, %v1091
    %v1140 = vsub.f32 %v1011, %v1092
    %v1141 = vsub.f32 %v1063, %v1093
    %v1142 = vadd.f32 %v1134, 1e-05
    %v1143 = vadd.f32 %v1135, 1e-05
    %v1144 = vadd.f32 %v1136, 1e-05
    %v1145 = vadd.f32 %v1137, 1e-05
    %v1146 = vrsqrt.pop %v1142
    %v1147 = vmul.f32 %v1146, %v1142
    %v1148 = vmul.f32 %v1147, %v1146
    %v1149 = vmul.f32 0.5, %v1148
    %v1150 = vsub.f32 1.5, %v1149
    %v1151 = vmul.f32 %v1146, %v1150
    %vm1152 = vweird.f32 %v1142
    %vm1153 = vweird.f32 %v1146
    %vm1154 = vmor %vm1152, %vm1153
    %v1155 = vsel %vm1154, %v1146, %v1151
    %v1156 = vrsqrt.pop %v1143
    %v1157 = vmul.f32 %v1156, %v1143
    %v1158 = vmul.f32 %v1157, %v1156
    %v1159 = vmul.f32 0.5, %v1158
    %v1160 = vsub.f32 1.5, %v1159
    %v1161 = vmul.f32 %v1156, %v1160
    %vm1162 = vweird.f32 %v1143
    %vm1163 = vweird.f32 %v1156
    %vm1164 = vmor %vm1162, %vm1163
    %v1165 = vsel %vm1164, %v1156, %v1161
    %v1166 = vrsqrt.pop %v1144
    %v1167 = vmul.f32 %v1166, %v1144
    %v1168 = vmul.f32 %v1167, %v1166
    %v1169 = vmul.f32 0.5, %v1168
    %v1170 = vsub.f32 1.5, %v1169
    %v1171 = vmul.f32 %v1166, %v1170
    %vm1172 = vweird.f32 %v1144
    %vm1173 = vweird.f32 %v1166
    %vm1174 = vmor %vm1172, %vm1173
    %v1175 = vsel %vm1174, %v1166, %v1171
    %v1176 = vrsqrt.pop %v1145
    %v1177 = vmul.f32 %v1176, %v1145
    %v1178 = vmul.f32 %v1177, %v1176
    %v1179 = vmul.f32 0.5, %v1178
    %v1180 = vsub.f32 1.5, %v1179
    %v1181 = vmul.f32 %v1176, %v1180
    %vm1182 = vweird.f32 %v1145
    %vm1183 = vweird.f32 %v1176
    %vm1184 = vmor %vm1182, %vm1183
    %v1185 = vsel %vm1184, %v1176, %v1181
    %v1186 = vmul.f32 %v1138, %v1155
    %v1187 = vmul.f32 %v1139, %v1165
    %v1188 = vmul.f32 %v1140, %v1175
    %v1189 = vmul.f32 %v1141, %v1185
    %v1190 = vld [vmem:[%s2 + $0x4] sm:$0xf]
    %v1192 = vperm.slane %v1190, 0
    %v1193 = vperm.slane %v1190, 1
    %v1194 = vperm.slane %v1190, 2
    %v1195 = vperm.slane %v1190, 3
    %v1200 = vmul.f32 %v1186, %v1192
    %v1201 = vmul.f32 %v1187, %v1193
    %v1202 = vmul.f32 %v1188, %v1194
    %v1203 = vmul.f32 %v1189, %v1195
    %v1204 = vld [vmem:[%s2 + $0x8] sm:$0xf]
    %v1206 = vperm.slane %v1204, 0
    %v1207 = vperm.slane %v1204, 1
    %v1208 = vperm.slane %v1204, 2
    %v1209 = vperm.slane %v1204, 3
    %v1214 = vadd.f32 %v1200, %v1206
    %v1215 = vadd.f32 %v1201, %v1207
    %v1216 = vadd.f32 %v1202, %v1208
    %v1217 = vadd.f32 %v1203, %v1209
    %v1218 = vmax.f32 %v1214, 0.0
    %v1219 = vmax.f32 %v1215, 0.0
    %v1220 = vmax.f32 %v1216, 0.0
    %v1221 = vmax.f32 %v1217, 0.0
    %v1222 = vpack.c.bf16 %v1218, %v1218
    %v1223 = vpack.c.bf16 %v1219, %v1219
    %v1224 = vpack.c.bf16 %v1220, %v1220
    %v1225 = vpack.c.bf16 %v1221, %v1221
    %v1226 = vld [vmem:[#allocation4] sm:$0xff]
    %v1227 = vld [vmem:[#allocation4 + $0x8] sm:$0xff]
    %v1228 = vld [vmem:[#allocation4 + $0x10] sm:$0xff]
    %v1229 = vld [vmem:[#allocation4 + $0x18] sm:$0xff]
    %v1230 = vld [vmem:[#allocation4 + $0x20] sm:$0xff]
    %v1231 = vld [vmem:[#allocation4 + $0x28] sm:$0xff]
    %v1232 = vld [vmem:[#allocation4 + $0x30] sm:$0xff]
    %v1233 = vld [vmem:[#allocation4 + $0x38] sm:$0xff]
    %v1234 = vld [vmem:[#allocation4 + $0x40] sm:$0xff]
    %v1235 = vld [vmem:[#allocation4 + $0x48] sm:$0xff]
    %v1236 = vld [vmem:[#allocation4 + $0x50] sm:$0xff]
    %v1237 = vld [vmem:[#allocation4 + $0x58] sm:$0xff]
    %v1238 = vld [vmem:[#allocation4 + $0x60] sm:$0xff]
    %v1239 = vld [vmem:[#allocation4 + $0x68] sm:$0xff]
    %v1240 = vld [vmem:[#allocation4 + $0x70] sm:$0xff]
    %v1241 = vld [vmem:[#allocation4 + $0x78] sm:$0xff]
    %v1242 = vld [vmem:[#allocation4 + $0x80] sm:$0xff]
    %v1243 = vld [vmem:[#allocation4 + $0x88] sm:$0xff]
    %v1244 = vld [vmem:[#allocation4 + $0x90] sm:$0xff]
    %v1245 = vld [vmem:[#allocation4 + $0x98] sm:$0xff]
    %v1246 = vld [vmem:[#allocation4 + $0xa0] sm:$0xff]
    %v1247 = vld [vmem:[#allocation4 + $0xa8] sm:$0xff]
    %v1248 = vld [vmem:[#allocation4 + $0xb0] sm:$0xff]
    %v1249 = vld [vmem:[#allocation4 + $0xb8] sm:$0xff]
    %v1250 = vld [vmem:[#allocation4 + $0xc0] sm:$0xff]
    %v1251 = vld [vmem:[#allocation4 + $0xc8] sm:$0xff]
    %v1252 = vld [vmem:[#allocation4 + $0xd0] sm:$0xff]
    %v1253 = vld [vmem:[#allocation4 + $0xd8] sm:$0xff]
    %v1254 = vld [vmem:[#allocation4 + $0xe0] sm:$0xff]
    %v1255 = vld [vmem:[#allocation4 + $0xe8] sm:$0xff]
    %v1256 = vld [vmem:[#allocation4 + $0xf0] sm:$0xff]
    %v1257 = vld [vmem:[#allocation4 + $0xf8] sm:$0xff]
    %v1258 = vld [vmem:[#allocation4 + $0x100] sm:$0xff]
    %v1259 = vld [vmem:[#allocation4 + $0x108] sm:$0xff]
    %v1260 = vld [vmem:[#allocation4 + $0x110] sm:$0xff]
    %v1261 = vld [vmem:[#allocation4 + $0x118] sm:$0xff]
    %v1262 = vld [vmem:[#allocation4 + $0x120] sm:$0xff]
    %v1263 = vld [vmem:[#allocation4 + $0x128] sm:$0xff]
    %v1264 = vld [vmem:[#allocation4 + $0x130] sm:$0xff]
    %v1265 = vld [vmem:[#allocation4 + $0x138] sm:$0xff]
    %v1266 = vld [vmem:[#allocation4 + $0x140] sm:$0xff]
    %v1267 = vld [vmem:[#allocation4 + $0x148] sm:$0xff]
    %v1268 = vld [vmem:[#allocation4 + $0x150] sm:$0xff]
    %v1269 = vld [vmem:[#allocation4 + $0x158] sm:$0xff]
    %v1270 = vld [vmem:[#allocation4 + $0x160] sm:$0xff]
    %v1271 = vld [vmem:[#allocation4 + $0x168] sm:$0xff]
    %v1272 = vld [vmem:[#allocation4 + $0x170] sm:$0xff]
    %v1273 = vld [vmem:[#allocation4 + $0x178] sm:$0xff]
    %v1274 = vld [vmem:[#allocation4 + $0x180] sm:$0xff]
    %v1275 = vld [vmem:[#allocation4 + $0x188] sm:$0xff]
    %v1276 = vld [vmem:[#allocation4 + $0x190] sm:$0xff]
    %v1277 = vld [vmem:[#allocation4 + $0x198] sm:$0xff]
    %v1278 = vld [vmem:[#allocation4 + $0x1a0] sm:$0xff]
    %v1279 = vld [vmem:[#allocation4 + $0x1a8] sm:$0xff]
    %v1280 = vld [vmem:[#allocation4 + $0x1b0] sm:$0xff]
    %v1281 = vld [vmem:[#allocation4 + $0x1b8] sm:$0xff]
    %v1282 = vld [vmem:[#allocation4 + $0x1c0] sm:$0xff]
    %v1283 = vld [vmem:[#allocation4 + $0x1c8] sm:$0xff]
    %v1284 = vld [vmem:[#allocation4 + $0x1d0] sm:$0xff]
    %v1285 = vld [vmem:[#allocation4 + $0x1d8] sm:$0xff]
    %v1286 = vld [vmem:[#allocation4 + $0x1e0] sm:$0xff]
    %v1287 = vld [vmem:[#allocation4 + $0x1e8] sm:$0xff]
    %v1288 = vld [vmem:[#allocation4 + $0x1f0] sm:$0xff]
    %v1289 = vld [vmem:[#allocation4 + $0x1f8] sm:$0xff]
    %v1290 = vld [vmem:[#allocation4 + $0x200] sm:$0xff]
    %v1291 = vld [vmem:[#allocation4 + $0x208] sm:$0xff]
    %v1292 = vld [vmem:[#allocation4 + $0x210] sm:$0xff]
    %v1293 = vld [vmem:[#allocation4 + $0x218] sm:$0xff]
    %v1294 = vld [vmem:[#allocation4 + $0x220] sm:$0xff]
    %v1295 = vld [vmem:[#allocation4 + $0x228] sm:$0xff]
    %v1296 = vld [vmem:[#allocation4 + $0x230] sm:$0xff]
    %v1297 = vld [vmem:[#allocation4 + $0x238] sm:$0xff]
    %v1298 = vld [vmem:[#allocation4 + $0x240] sm:$0xff]
    %v1299 = vld [vmem:[#allocation4 + $0x248] sm:$0xff]
    %v1300 = vld [vmem:[#allocation4 + $0x250] sm:$0xff]
    %v1301 = vld [vmem:[#allocation4 + $0x258] sm:$0xff]
    %v1302 = vld [vmem:[#allocation4 + $0x260] sm:$0xff]
    %v1303 = vld [vmem:[#allocation4 + $0x268] sm:$0xff]
    %v1304 = vld [vmem:[#allocation4 + $0x270] sm:$0xff]
    %v1305 = vld [vmem:[#allocation4 + $0x278] sm:$0xff]
    %v1306 = vld [vmem:[#allocation4 + $0x280] sm:$0xff]
    %v1307 = vld [vmem:[#allocation4 + $0x288] sm:$0xff]
    %v1308 = vld [vmem:[#allocation4 + $0x290] sm:$0xff]
    %v1309 = vld [vmem:[#allocation4 + $0x298] sm:$0xff]
    %v1310 = vld [vmem:[#allocation4 + $0x2a0] sm:$0xff]
    %v1311 = vld [vmem:[#allocation4 + $0x2a8] sm:$0xff]
    %v1312 = vld [vmem:[#allocation4 + $0x2b0] sm:$0xff]
    %v1313 = vld [vmem:[#allocation4 + $0x2b8] sm:$0xff]
    %v1314 = vld [vmem:[#allocation4 + $0x2c0] sm:$0xff]
    %v1315 = vld [vmem:[#allocation4 + $0x2c8] sm:$0xff]
    %v1316 = vld [vmem:[#allocation4 + $0x2d0] sm:$0xff]
    %v1317 = vld [vmem:[#allocation4 + $0x2d8] sm:$0xff]
    %v1318 = vld [vmem:[#allocation4 + $0x2e0] sm:$0xff]
    %v1319 = vld [vmem:[#allocation4 + $0x2e8] sm:$0xff]
    %v1320 = vld [vmem:[#allocation4 + $0x2f0] sm:$0xff]
    %v1321 = vld [vmem:[#allocation4 + $0x2f8] sm:$0xff]
    %v1322 = vld [vmem:[#allocation4 + $0x300] sm:$0xff]
    %v1323 = vld [vmem:[#allocation4 + $0x308] sm:$0xff]
    %v1324 = vld [vmem:[#allocation4 + $0x310] sm:$0xff]
    %v1325 = vld [vmem:[#allocation4 + $0x318] sm:$0xff]
    %v1326 = vld [vmem:[#allocation4 + $0x320] sm:$0xff]
    %v1327 = vld [vmem:[#allocation4 + $0x328] sm:$0xff]
    %v1328 = vld [vmem:[#allocation4 + $0x330] sm:$0xff]
    %v1329 = vld [vmem:[#allocation4 + $0x338] sm:$0xff]
    %v1330 = vld [vmem:[#allocation4 + $0x340] sm:$0xff]
    %v1331 = vld [vmem:[#allocation4 + $0x348] sm:$0xff]
    %v1332 = vld [vmem:[#allocation4 + $0x350] sm:$0xff]
    %v1333 = vld [vmem:[#allocation4 + $0x358] sm:$0xff]
    %v1334 = vld [vmem:[#allocation4 + $0x360] sm:$0xff]
    %v1335 = vld [vmem:[#allocation4 + $0x368] sm:$0xff]
    %v1336 = vld [vmem:[#allocation4 + $0x370] sm:$0xff]
    %v1337 = vld [vmem:[#allocation4 + $0x378] sm:$0xff]
    %v1338 = vld [vmem:[#allocation4 + $0x380] sm:$0xff]
    %v1339 = vld [vmem:[#allocation4 + $0x388] sm:$0xff]
    %v1340 = vld [vmem:[#allocation4 + $0x390] sm:$0xff]
    %v1341 = vld [vmem:[#allocation4 + $0x398] sm:$0xff]
    %v1342 = vld [vmem:[#allocation4 + $0x3a0] sm:$0xff]
    %v1343 = vld [vmem:[#allocation4 + $0x3a8] sm:$0xff]
    %v1344 = vld [vmem:[#allocation4 + $0x3b0] sm:$0xff]
    %v1345 = vld [vmem:[#allocation4 + $0x3b8] sm:$0xff]
    %v1346 = vld [vmem:[#allocation4 + $0x3c0] sm:$0xff]
    %v1347 = vld [vmem:[#allocation4 + $0x3c8] sm:$0xff]
    %v1348 = vld [vmem:[#allocation4 + $0x3d0] sm:$0xff]
    %v1349 = vld [vmem:[#allocation4 + $0x3d8] sm:$0xff]
    %v1350 = vld [vmem:[#allocation4 + $0x3e0] sm:$0xff]
    %v1351 = vld [vmem:[#allocation4 + $0x3e8] sm:$0xff]
    %v1352 = vld [vmem:[#allocation4 + $0x3f0] sm:$0xff]
    %v1353 = vld [vmem:[#allocation4 + $0x3f8] sm:$0xff]
    %v1354 = vld [vmem:[%s2 + $0xc] sm:$0xf]
    %v1356 = vperm.slane %v1354, 0
    %v1357 = vperm.slane %v1354, 1
    %v1358 = vperm.slane %v1354, 2
    %v1359 = vperm.slane %v1354, 3
    %v1492 = vunpack.c.l.b16 %v1226
    %v1493 = vunpack.c.h.b16 %v1226
    %v1494 = vunpack.c.l.b16 %v1227
    %v1495 = vunpack.c.h.b16 %v1227
    %v1496 = vunpack.c.l.b16 %v1228
    %v1497 = vunpack.c.h.b16 %v1228
    %v1498 = vunpack.c.l.b16 %v1229
    %v1499 = vunpack.c.h.b16 %v1229
    %v1500 = vunpack.c.l.b16 %v1230
    %v1501 = vunpack.c.h.b16 %v1230
    %v1502 = vunpack.c.l.b16 %v1231
    %v1503 = vunpack.c.h.b16 %v1231
    %v1504 = vunpack.c.l.b16 %v1232
    %v1505 = vunpack.c.h.b16 %v1232
    %v1506 = vunpack.c.l.b16 %v1233
    %v1507 = vunpack.c.h.b16 %v1233
    %v1508 = vunpack.c.l.b16 %v1234
    %v1509 = vunpack.c.h.b16 %v1234
    %v1510 = vunpack.c.l.b16 %v1235
    %v1511 = vunpack.c.h.b16 %v1235
    %v1512 = vunpack.c.l.b16 %v1236
    %v1513 = vunpack.c.h.b16 %v1236
    %v1514 = vunpack.c.l.b16 %v1237
    %v1515 = vunpack.c.h.b16 %v1237
    %v1516 = vunpack.c.l.b16 %v1238
    %v1517 = vunpack.c.h.b16 %v1238
    %v1518 = vunpack.c.l.b16 %v1239
    %v1519 = vunpack.c.h.b16 %v1239
    %v1520 = vunpack.c.l.b16 %v1240
    %v1521 = vunpack.c.h.b16 %v1240
    %v1522 = vunpack.c.l.b16 %v1241
    %v1523 = vunpack.c.h.b16 %v1241
    %v1524 = vunpack.c.l.b16 %v1242
    %v1525 = vunpack.c.h.b16 %v1242
    %v1526 = vunpack.c.l.b16 %v1243
    %v1527 = vunpack.c.h.b16 %v1243
    %v1528 = vunpack.c.l.b16 %v1244
    %v1529 = vunpack.c.h.b16 %v1244
    %v1530 = vunpack.c.l.b16 %v1245
    %v1531 = vunpack.c.h.b16 %v1245
    %v1532 = vunpack.c.l.b16 %v1246
    %v1533 = vunpack.c.h.b16 %v1246
    %v1534 = vunpack.c.l.b16 %v1247
    %v1535 = vunpack.c.h.b16 %v1247
    %v1536 = vunpack.c.l.b16 %v1248
    %v1537 = vunpack.c.h.b16 %v1248
    %v1538 = vunpack.c.l.b16 %v1249
    %v1539 = vunpack.c.h.b16 %v1249
    %v1540 = vunpack.c.l.b16 %v1250
    %v1541 = vunpack.c.h.b16 %v1250
    %v1542 = vunpack.c.l.b16 %v1251
    %v1543 = vunpack.c.h.b16 %v1251
    %v1544 = vunpack.c.l.b16 %v1252
    %v1545 = vunpack.c.h.b16 %v1252
    %v1546 = vunpack.c.l.b16 %v1253
    %v1547 = vunpack.c.h.b16 %v1253
    %v1548 = vunpack.c.l.b16 %v1254
    %v1549 = vunpack.c.h.b16 %v1254
    %v1550 = vunpack.c.l.b16 %v1255
    %v1551 = vunpack.c.h.b16 %v1255
    %v1552 = vunpack.c.l.b16 %v1256
    %v1553 = vunpack.c.h.b16 %v1256
    %v1554 = vunpack.c.l.b16 %v1257
    %v1555 = vunpack.c.h.b16 %v1257
    %v1556 = vunpack.c.l.b16 %v1258
    %v1557 = vunpack.c.h.b16 %v1258
    %v1558 = vunpack.c.l.b16 %v1259
    %v1559 = vunpack.c.h.b16 %v1259
    %v1560 = vunpack.c.l.b16 %v1260
    %v1561 = vunpack.c.h.b16 %v1260
    %v1562 = vunpack.c.l.b16 %v1261
    %v1563 = vunpack.c.h.b16 %v1261
    %v1564 = vunpack.c.l.b16 %v1262
    %v1565 = vunpack.c.h.b16 %v1262
    %v1566 = vunpack.c.l.b16 %v1263
    %v1567 = vunpack.c.h.b16 %v1263
    %v1568 = vunpack.c.l.b16 %v1264
    %v1569 = vunpack.c.h.b16 %v1264
    %v1570 = vunpack.c.l.b16 %v1265
    %v1571 = vunpack.c.h.b16 %v1265
    %v1572 = vunpack.c.l.b16 %v1266
    %v1573 = vunpack.c.h.b16 %v1266
    %v1574 = vunpack.c.l.b16 %v1267
    %v1575 = vunpack.c.h.b16 %v1267
    %v1576 = vunpack.c.l.b16 %v1268
    %v1577 = vunpack.c.h.b16 %v1268
    %v1578 = vunpack.c.l.b16 %v1269
    %v1579 = vunpack.c.h.b16 %v1269
    %v1580 = vunpack.c.l.b16 %v1270
    %v1581 = vunpack.c.h.b16 %v1270
    %v1582 = vunpack.c.l.b16 %v1271
    %v1583 = vunpack.c.h.b16 %v1271
    %v1584 = vunpack.c.l.b16 %v1272
    %v1585 = vunpack.c.h.b16 %v1272
    %v1586 = vunpack.c.l.b16 %v1273
    %v1587 = vunpack.c.h.b16 %v1273
    %v1588 = vunpack.c.l.b16 %v1274
    %v1589 = vunpack.c.h.b16 %v1274
    %v1590 = vunpack.c.l.b16 %v1275
    %v1591 = vunpack.c.h.b16 %v1275
    %v1592 = vunpack.c.l.b16 %v1276
    %v1593 = vunpack.c.h.b16 %v1276
    %v1594 = vunpack.c.l.b16 %v1277
    %v1595 = vunpack.c.h.b16 %v1277
    %v1596 = vunpack.c.l.b16 %v1278
    %v1597 = vunpack.c.h.b16 %v1278
    %v1598 = vunpack.c.l.b16 %v1279
    %v1599 = vunpack.c.h.b16 %v1279
    %v1600 = vunpack.c.l.b16 %v1280
    %v1601 = vunpack.c.h.b16 %v1280
    %v1602 = vunpack.c.l.b16 %v1281
    %v1603 = vunpack.c.h.b16 %v1281
    %v1604 = vunpack.c.l.b16 %v1282
    %v1605 = vunpack.c.h.b16 %v1282
    %v1606 = vunpack.c.l.b16 %v1283
    %v1607 = vunpack.c.h.b16 %v1283
    %v1608 = vunpack.c.l.b16 %v1284
    %v1609 = vunpack.c.h.b16 %v1284
    %v1610 = vunpack.c.l.b16 %v1285
    %v1611 = vunpack.c.h.b16 %v1285
    %v1612 = vunpack.c.l.b16 %v1286
    %v1613 = vunpack.c.h.b16 %v1286
    %v1614 = vunpack.c.l.b16 %v1287
    %v1615 = vunpack.c.h.b16 %v1287
    %v1616 = vunpack.c.l.b16 %v1288
    %v1617 = vunpack.c.h.b16 %v1288
    %v1618 = vunpack.c.l.b16 %v1289
    %v1619 = vunpack.c.h.b16 %v1289
    %v1620 = vunpack.c.l.b16 %v1290
    %v1621 = vunpack.c.h.b16 %v1290
    %v1622 = vunpack.c.l.b16 %v1291
    %v1623 = vunpack.c.h.b16 %v1291
    %v1624 = vunpack.c.l.b16 %v1292
    %v1625 = vunpack.c.h.b16 %v1292
    %v1626 = vunpack.c.l.b16 %v1293
    %v1627 = vunpack.c.h.b16 %v1293
    %v1628 = vunpack.c.l.b16 %v1294
    %v1629 = vunpack.c.h.b16 %v1294
    %v1630 = vunpack.c.l.b16 %v1295
    %v1631 = vunpack.c.h.b16 %v1295
    %v1632 = vunpack.c.l.b16 %v1296
    %v1633 = vunpack.c.h.b16 %v1296
    %v1634 = vunpack.c.l.b16 %v1297
    %v1635 = vunpack.c.h.b16 %v1297
    %v1636 = vunpack.c.l.b16 %v1298
    %v1637 = vunpack.c.h.b16 %v1298
    %v1638 = vunpack.c.l.b16 %v1299
    %v1639 = vunpack.c.h.b16 %v1299
    %v1640 = vunpack.c.l.b16 %v1300
    %v1641 = vunpack.c.h.b16 %v1300
    %v1642 = vunpack.c.l.b16 %v1301
    %v1643 = vunpack.c.h.b16 %v1301
    %v1644 = vunpack.c.l.b16 %v1302
    %v1645 = vunpack.c.h.b16 %v1302
    %v1646 = vunpack.c.l.b16 %v1303
    %v1647 = vunpack.c.h.b16 %v1303
    %v1648 = vunpack.c.l.b16 %v1304
    %v1649 = vunpack.c.h.b16 %v1304
    %v1650 = vunpack.c.l.b16 %v1305
    %v1651 = vunpack.c.h.b16 %v1305
    %v1652 = vunpack.c.l.b16 %v1306
    %v1653 = vunpack.c.h.b16 %v1306
    %v1654 = vunpack.c.l.b16 %v1307
    %v1655 = vunpack.c.h.b16 %v1307
    %v1656 = vunpack.c.l.b16 %v1308
    %v1657 = vunpack.c.h.b16 %v1308
    %v1658 = vunpack.c.l.b16 %v1309
    %v1659 = vunpack.c.h.b16 %v1309
    %v1660 = vunpack.c.l.b16 %v1310
    %v1661 = vunpack.c.h.b16 %v1310
    %v1662 = vunpack.c.l.b16 %v1311
    %v1663 = vunpack.c.h.b16 %v1311
    %v1664 = vunpack.c.l.b16 %v1312
    %v1665 = vunpack.c.h.b16 %v1312
    %v1666 = vunpack.c.l.b16 %v1313
    %v1667 = vunpack.c.h.b16 %v1313
    %v1668 = vunpack.c.l.b16 %v1314
    %v1669 = vunpack.c.h.b16 %v1314
    %v1670 = vunpack.c.l.b16 %v1315
    %v1671 = vunpack.c.h.b16 %v1315
    %v1672 = vunpack.c.l.b16 %v1316
    %v1673 = vunpack.c.h.b16 %v1316
    %v1674 = vunpack.c.l.b16 %v1317
    %v1675 = vunpack.c.h.b16 %v1317
    %v1676 = vunpack.c.l.b16 %v1318
    %v1677 = vunpack.c.h.b16 %v1318
    %v1678 = vunpack.c.l.b16 %v1319
    %v1679 = vunpack.c.h.b16 %v1319
    %v1680 = vunpack.c.l.b16 %v1320
    %v1681 = vunpack.c.h.b16 %v1320
    %v1682 = vunpack.c.l.b16 %v1321
    %v1683 = vunpack.c.h.b16 %v1321
    %v1684 = vunpack.c.l.b16 %v1322
    %v1685 = vunpack.c.h.b16 %v1322
    %v1686 = vunpack.c.l.b16 %v1323
    %v1687 = vunpack.c.h.b16 %v1323
    %v1688 = vunpack.c.l.b16 %v1324
    %v1689 = vunpack.c.h.b16 %v1324
    %v1690 = vunpack.c.l.b16 %v1325
    %v1691 = vunpack.c.h.b16 %v1325
    %v1692 = vunpack.c.l.b16 %v1326
    %v1693 = vunpack.c.h.b16 %v1326
    %v1694 = vunpack.c.l.b16 %v1327
    %v1695 = vunpack.c.h.b16 %v1327
    %v1696 = vunpack.c.l.b16 %v1328
    %v1697 = vunpack.c.h.b16 %v1328
    %v1698 = vunpack.c.l.b16 %v1329
    %v1699 = vunpack.c.h.b16 %v1329
    %v1700 = vunpack.c.l.b16 %v1330
    %v1701 = vunpack.c.h.b16 %v1330
    %v1702 = vunpack.c.l.b16 %v1331
    %v1703 = vunpack.c.h.b16 %v1331
    %v1704 = vunpack.c.l.b16 %v1332
    %v1705 = vunpack.c.h.b16 %v1332
    %v1706 = vunpack.c.l.b16 %v1333
    %v1707 = vunpack.c.h.b16 %v1333
    %v1708 = vunpack.c.l.b16 %v1334
    %v1709 = vunpack.c.h.b16 %v1334
    %v1710 = vunpack.c.l.b16 %v1335
    %v1711 = vunpack.c.h.b16 %v1335
    %v1712 = vunpack.c.l.b16 %v1336
    %v1713 = vunpack.c.h.b16 %v1336
    %v1714 = vunpack.c.l.b16 %v1337
    %v1715 = vunpack.c.h.b16 %v1337
    %v1716 = vunpack.c.l.b16 %v1338
    %v1717 = vunpack.c.h.b16 %v1338
    %v1718 = vunpack.c.l.b16 %v1339
    %v1719 = vunpack.c.h.b16 %v1339
    %v1720 = vunpack.c.l.b16 %v1340
    %v1721 = vunpack.c.h.b16 %v1340
    %v1722 = vunpack.c.l.b16 %v1341
    %v1723 = vunpack.c.h.b16 %v1341
    %v1724 = vunpack.c.l.b16 %v1342
    %v1725 = vunpack.c.h.b16 %v1342
    %v1726 = vunpack.c.l.b16 %v1343
    %v1727 = vunpack.c.h.b16 %v1343
    %v1728 = vunpack.c.l.b16 %v1344
    %v1729 = vunpack.c.h.b16 %v1344
    %v1730 = vunpack.c.l.b16 %v1345
    %v1731 = vunpack.c.h.b16 %v1345
    %v1732 = vunpack.c.l.b16 %v1346
    %v1733 = vunpack.c.h.b16 %v1346
    %v1734 = vunpack.c.l.b16 %v1347
    %v1735 = vunpack.c.h.b16 %v1347
    %v1736 = vunpack.c.l.b16 %v1348
    %v1737 = vunpack.c.h.b16 %v1348
    %v1738 = vunpack.c.l.b16 %v1349
    %v1739 = vunpack.c.h.b16 %v1349
    %v1740 = vunpack.c.l.b16 %v1350
    %v1741 = vunpack.c.h.b16 %v1350
    %v1742 = vunpack.c.l.b16 %v1351
    %v1743 = vunpack.c.h.b16 %v1351
    %v1744 = vunpack.c.l.b16 %v1352
    %v1745 = vunpack.c.h.b16 %v1352
    %v1746 = vunpack.c.l.b16 %v1353
    %v1747 = vunpack.c.h.b16 %v1353
    %v1748 = vpack.c.b16 %v1496, %v1492
    %v1749 = vpack.c.b16 %v1497, %v1493
    %v1750 = vpack.c.b16 %v1498, %v1494
    %v1751 = vpack.c.b16 %v1499, %v1495
    %v1752 = vpack.c.b16 %v1504, %v1500
    %v1753 = vpack.c.b16 %v1505, %v1501
    %v1754 = vpack.c.b16 %v1506, %v1502
    %v1755 = vpack.c.b16 %v1507, %v1503
    %v1756 = vpack.c.b16 %v1512, %v1508
    %v1757 = vpack.c.b16 %v1513, %v1509
    %v1758 = vpack.c.b16 %v1514, %v1510
    %v1759 = vpack.c.b16 %v1515, %v1511
    %v1760 = vpack.c.b16 %v1520, %v1516
    %v1761 = vpack.c.b16 %v1521, %v1517
    %v1762 = vpack.c.b16 %v1522, %v1518
    %v1763 = vpack.c.b16 %v1523, %v1519
    %v1764 = vpack.c.b16 %v1528, %v1524
    %v1765 = vpack.c.b16 %v1529, %v1525
    %v1766 = vpack.c.b16 %v1530, %v1526
    %v1767 = vpack.c.b16 %v1531, %v1527
    %v1768 = vpack.c.b16 %v1536, %v1532
    %v1769 = vpack.c.b16 %v1537, %v1533
    %v1770 = vpack.c.b16 %v1538, %v1534
    %v1771 = vpack.c.b16 %v1539, %v1535
    %v1772 = vpack.c.b16 %v1544, %v1540
    %v1773 = vpack.c.b16 %v1545, %v1541
    %v1774 = vpack.c.b16 %v1546, %v1542
    %v1775 = vpack.c.b16 %v1547, %v1543
    %v1776 = vpack.c.b16 %v1552, %v1548
    %v1777 = vpack.c.b16 %v1553, %v1549
    %v1778 = vpack.c.b16 %v1554, %v1550
    %v1779 = vpack.c.b16 %v1555, %v1551
    %v1780 = vpack.c.b16 %v1560, %v1556
    %v1781 = vpack.c.b16 %v1561, %v1557
    %v1782 = vpack.c.b16 %v1562, %v1558
    %v1783 = vpack.c.b16 %v1563, %v1559
    %v1784 = vpack.c.b16 %v1568, %v1564
    %v1785 = vpack.c.b16 %v1569, %v1565
    %v1786 = vpack.c.b16 %v1570, %v1566
    %v1787 = vpack.c.b16 %v1571, %v1567
    %v1788 = vpack.c.b16 %v1576, %v1572
    %v1789 = vpack.c.b16 %v1577, %v1573
    %v1790 = vpack.c.b16 %v1578, %v1574
    %v1791 = vpack.c.b16 %v1579, %v1575
    %v1792 = vpack.c.b16 %v1584, %v1580
    %v1793 = vpack.c.b16 %v1585, %v1581
    %v1794 = vpack.c.b16 %v1586, %v1582
    %v1795 = vpack.c.b16 %v1587, %v1583
    %v1796 = vpack.c.b16 %v1592, %v1588
    %v1797 = vpack.c.b16 %v1593, %v1589
    %v1798 = vpack.c.b16 %v1594, %v1590
    %v1799 = vpack.c.b16 %v1595, %v1591
    %v1800 = vpack.c.b16 %v1600, %v1596
    %v1801 = vpack.c.b16 %v1601, %v1597
    %v1802 = vpack.c.b16 %v1602, %v1598
    %v1803 = vpack.c.b16 %v1603, %v1599
    %v1804 = vpack.c.b16 %v1608, %v1604
    %v1805 = vpack.c.b16 %v1609, %v1605
    %v1806 = vpack.c.b16 %v1610, %v1606
    %v1807 = vpack.c.b16 %v1611, %v1607
    %v1808 = vpack.c.b16 %v1616, %v1612
    %v1809 = vpack.c.b16 %v1617, %v1613
    %v1810 = vpack.c.b16 %v1618, %v1614
    %v1811 = vpack.c.b16 %v1619, %v1615
    %v1812 = vpack.c.b16 %v1624, %v1620
    %v1813 = vpack.c.b16 %v1625, %v1621
    %v1814 = vpack.c.b16 %v1626, %v1622
    %v1815 = vpack.c.b16 %v1627, %v1623
    %v1816 = vpack.c.b16 %v1632, %v1628
    %v1817 = vpack.c.b16 %v1633, %v1629
    %v1818 = vpack.c.b16 %v1634, %v1630
    %v1819 = vpack.c.b16 %v1635, %v1631
    %v1820 = vpack.c.b16 %v1640, %v1636
    %v1821 = vpack.c.b16 %v1641, %v1637
    %v1822 = vpack.c.b16 %v1642, %v1638
    %v1823 = vpack.c.b16 %v1643, %v1639
    %v1824 = vpack.c.b16 %v1648, %v1644
    %v1825 = vpack.c.b16 %v1649, %v1645
    %v1826 = vpack.c.b16 %v1650, %v1646
    %v1827 = vpack.c.b16 %v1651, %v1647
    %v1828 = vpack.c.b16 %v1656, %v1652
    %v1829 = vpack.c.b16 %v1657, %v1653
    %v1830 = vpack.c.b16 %v1658, %v1654
    %v1831 = vpack.c.b16 %v1659, %v1655
    %v1832 = vpack.c.b16 %v1664, %v1660
    %v1833 = vpack.c.b16 %v1665, %v1661
    %v1834 = vpack.c.b16 %v1666, %v1662
    %v1835 = vpack.c.b16 %v1667, %v1663
    %v1836 = vpack.c.b16 %v1672, %v1668
    %v1837 = vpack.c.b16 %v1673, %v1669
    %v1838 = vpack.c.b16 %v1674, %v1670
    %v1839 = vpack.c.b16 %v1675, %v1671
    %v1840 = vpack.c.b16 %v1680, %v1676
    %v1841 = vpack.c.b16 %v1681, %v1677
    %v1842 = vpack.c.b16 %v1682, %v1678
    %v1843 = vpack.c.b16 %v1683, %v1679
    %v1844 = vpack.c.b16 %v1688, %v1684
    %v1845 = vpack.c.b16 %v1689, %v1685
    %v1846 = vpack.c.b16 %v1690, %v1686
    %v1847 = vpack.c.b16 %v1691, %v1687
    %v1848 = vpack.c.b16 %v1696, %v1692
    %v1849 = vpack.c.b16 %v1697, %v1693
    %v1850 = vpack.c.b16 %v1698, %v1694
    %v1851 = vpack.c.b16 %v1699, %v1695
    %v1852 = vpack.c.b16 %v1704, %v1700
    %v1853 = vpack.c.b16 %v1705, %v1701
    %v1854 = vpack.c.b16 %v1706, %v1702
    %v1855 = vpack.c.b16 %v1707, %v1703
    %v1856 = vpack.c.b16 %v1712, %v1708
    %v1857 = vpack.c.b16 %v1713, %v1709
    %v1858 = vpack.c.b16 %v1714, %v1710
    %v1859 = vpack.c.b16 %v1715, %v1711
    %v1860 = vpack.c.b16 %v1720, %v1716
    %v1861 = vpack.c.b16 %v1721, %v1717
    %v1862 = vpack.c.b16 %v1722, %v1718
    %v1863 = vpack.c.b16 %v1723, %v1719
    %v1864 = vpack.c.b16 %v1728, %v1724
    %v1865 = vpack.c.b16 %v1729, %v1725
    %v1866 = vpack.c.b16 %v1730, %v1726
    %v1867 = vpack.c.b16 %v1731, %v1727
    %v1868 = vpack.c.b16 %v1736, %v1732
    %v1869 = vpack.c.b16 %v1737, %v1733
    %v1870 = vpack.c.b16 %v1738, %v1734
    %v1871 = vpack.c.b16 %v1739, %v1735
    %v1872 = vpack.c.b16 %v1744, %v1740
    %v1873 = vpack.c.b16 %v1745, %v1741
    %v1874 = vpack.c.b16 %v1746, %v1742
    %v1875 = vpack.c.b16 %v1747, %v1743
    %2004 = vmatpush.bf16.msra.mxu0 %v1776
    %2005 = vmatpush.bf16.msra.mxu0 %v1772
    %2006 = vmatpush.bf16.msra.mxu0 %v1768
    %2007 = vmatpush.bf16.msra.mxu0 %v1764
    %2008 = vmatpush.bf16.msra.mxu0 %v1760
    %2009 = vmatpush.bf16.msra.mxu0 %v1756
    %2010 = vmatpush.bf16.msra.mxu0 %v1752
    %2011 = vmatpush.bf16.msra.mxu0 %v1748
    %2012 = vmatmul.bf16.gmra.mxu0 %v1222
    %v2013 = vpop.f32.mrf.mxu0
    %v2014 = vadd.f32 %v1356, %v2013
    %v2015 = vpop.f32.mrf.mxu0
    %2016 = vdwg.mxu0
    %2017 = vmatpush.bf16.msra.mxu0 %v1808
    %2018 = vmatpush.bf16.msra.mxu0 %v1804
    %2019 = vmatpush.bf16.msra.mxu0 %v1800
    %2020 = vmatpush.bf16.msra.mxu0 %v1796
    %2021 = vmatpush.bf16.msra.mxu0 %v1792
    %2022 = vmatpush.bf16.msra.mxu0 %v1788
    %2023 = vmatpush.bf16.msra.mxu0 %v1784
    %2024 = vmatpush.bf16.msra.mxu0 %v1780
    %2025 = vmatmul.bf16.gmra.mxu0 %v1223
    %v2026 = vpop.f32.mrf.mxu0
    %v2027 = vadd.f32 %v2014, %v2026
    %v2028 = vpop.f32.mrf.mxu0
    %2029 = vdwg.mxu0
    %2030 = vmatpush.bf16.msra.mxu0 %v1840
    %2031 = vmatpush.bf16.msra.mxu0 %v1836
    %2032 = vmatpush.bf16.msra.mxu0 %v1832
    %2033 = vmatpush.bf16.msra.mxu0 %v1828
    %2034 = vmatpush.bf16.msra.mxu0 %v1824
    %2035 = vmatpush.bf16.msra.mxu0 %v1820
    %2036 = vmatpush.bf16.msra.mxu0 %v1816
    %2037 = vmatpush.bf16.msra.mxu0 %v1812
    %2038 = vmatmul.bf16.gmra.mxu0 %v1224
    %v2039 = vpop.f32.mrf.mxu0
    %v2040 = vadd.f32 %v2027, %v2039
    %v2041 = vpop.f32.mrf.mxu0
    %2042 = vdwg.mxu0
    %2043 = vmatpush.bf16.msra.mxu0 %v1872
    %2044 = vmatpush.bf16.msra.mxu0 %v1868
    %2045 = vmatpush.bf16.msra.mxu0 %v1864
    %2046 = vmatpush.bf16.msra.mxu0 %v1860
    %2047 = vmatpush.bf16.msra.mxu0 %v1856
    %2048 = vmatpush.bf16.msra.mxu0 %v1852
    %2049 = vmatpush.bf16.msra.mxu0 %v1848
    %2050 = vmatpush.bf16.msra.mxu0 %v1844
    %2051 = vmatmul.bf16.gmra.mxu0 %v1225
    %v2052 = vpop.f32.mrf.mxu0
    %v2053 = vadd.f32 %v2040, %v2052
    %v2054 = vpop.f32.mrf.mxu0
    %2055 = vdwg.mxu0
    %2056 = vmatpush.bf16.msra.mxu0 %v1777
    %2057 = vmatpush.bf16.msra.mxu0 %v1773
    %2058 = vmatpush.bf16.msra.mxu0 %v1769
    %2059 = vmatpush.bf16.msra.mxu0 %v1765
    %2060 = vmatpush.bf16.msra.mxu0 %v1761
    %2061 = vmatpush.bf16.msra.mxu0 %v1757
    %2062 = vmatpush.bf16.msra.mxu0 %v1753
    %2063 = vmatpush.bf16.msra.mxu0 %v1749
    %2064 = vmatmul.bf16.gmra.mxu0 %v1222
    %v2065 = vpop.f32.mrf.mxu0
    %v2066 = vadd.f32 %v1357, %v2065
    %v2067 = vpop.f32.mrf.mxu0
    %2068 = vdwg.mxu0
    %2069 = vmatpush.bf16.msra.mxu0 %v1809
    %2070 = vmatpush.bf16.msra.mxu0 %v1805
    %2071 = vmatpush.bf16.msra.mxu0 %v1801
    %2072 = vmatpush.bf16.msra.mxu0 %v1797
    %2073 = vmatpush.bf16.msra.mxu0 %v1793
    %2074 = vmatpush.bf16.msra.mxu0 %v1789
    %2075 = vmatpush.bf16.msra.mxu0 %v1785
    %2076 = vmatpush.bf16.msra.mxu0 %v1781
    %2077 = vmatmul.bf16.gmra.mxu0 %v1223
    %v2078 = vpop.f32.mrf.mxu0
    %v2079 = vadd.f32 %v2066, %v2078
    %v2080 = vpop.f32.mrf.mxu0
    %2081 = vdwg.mxu0
    %2082 = vmatpush.bf16.msra.mxu0 %v1841
    %2083 = vmatpush.bf16.msra.mxu0 %v1837
    %2084 = vmatpush.bf16.msra.mxu0 %v1833
    %2085 = vmatpush.bf16.msra.mxu0 %v1829
    %2086 = vmatpush.bf16.msra.mxu0 %v1825
    %2087 = vmatpush.bf16.msra.mxu0 %v1821
    %2088 = vmatpush.bf16.msra.mxu0 %v1817
    %2089 = vmatpush.bf16.msra.mxu0 %v1813
    %2090 = vmatmul.bf16.gmra.mxu0 %v1224
    %v2091 = vpop.f32.mrf.mxu0
    %v2092 = vadd.f32 %v2079, %v2091
    %v2093 = vpop.f32.mrf.mxu0
    %2094 = vdwg.mxu0
    %2095 = vmatpush.bf16.msra.mxu0 %v1873
    %2096 = vmatpush.bf16.msra.mxu0 %v1869
    %2097 = vmatpush.bf16.msra.mxu0 %v1865
    %2098 = vmatpush.bf16.msra.mxu0 %v1861
    %2099 = vmatpush.bf16.msra.mxu0 %v1857
    %2100 = vmatpush.bf16.msra.mxu0 %v1853
    %2101 = vmatpush.bf16.msra.mxu0 %v1849
    %2102 = vmatpush.bf16.msra.mxu0 %v1845
    %2103 = vmatmul.bf16.gmra.mxu0 %v1225
    %v2104 = vpop.f32.mrf.mxu0
    %v2105 = vadd.f32 %v2092, %v2104
    %v2106 = vpop.f32.mrf.mxu0
    %2107 = vdwg.mxu0
    %2108 = vmatpush.bf16.msra.mxu0 %v1778
    %2109 = vmatpush.bf16.msra.mxu0 %v1774
    %2110 = vmatpush.bf16.msra.mxu0 %v1770
    %2111 = vmatpush.bf16.msra.mxu0 %v1766
    %2112 = vmatpush.bf16.msra.mxu0 %v1762
    %2113 = vmatpush.bf16.msra.mxu0 %v1758
    %2114 = vmatpush.bf16.msra.mxu0 %v1754
    %2115 = vmatpush.bf16.msra.mxu0 %v1750
    %2116 = vmatmul.bf16.gmra.mxu0 %v1222
    %v2117 = vpop.f32.mrf.mxu0
    %v2118 = vadd.f32 %v1358, %v2117
    %v2119 = vpop.f32.mrf.mxu0
    %2120 = vdwg.mxu0
    %2121 = vmatpush.bf16.msra.mxu0 %v1810
    %2122 = vmatpush.bf16.msra.mxu0 %v1806
    %2123 = vmatpush.bf16.msra.mxu0 %v1802
    %2124 = vmatpush.bf16.msra.mxu0 %v1798
    %2125 = vmatpush.bf16.msra.mxu0 %v1794
    %2126 = vmatpush.bf16.msra.mxu0 %v1790
    %2127 = vmatpush.bf16.msra.mxu0 %v1786
    %2128 = vmatpush.bf16.msra.mxu0 %v1782
    %2129 = vmatmul.bf16.gmra.mxu0 %v1223
    %v2130 = vpop.f32.mrf.mxu0
    %v2131 = vadd.f32 %v2118, %v2130
    %v2132 = vpop.f32.mrf.mxu0
    %2133 = vdwg.mxu0
    %2134 = vmatpush.bf16.msra.mxu0 %v1842
    %2135 = vmatpush.bf16.msra.mxu0 %v1838
    %2136 = vmatpush.bf16.msra.mxu0 %v1834
    %2137 = vmatpush.bf16.msra.mxu0 %v1830
    %2138 = vmatpush.bf16.msra.mxu0 %v1826
    %2139 = vmatpush.bf16.msra.mxu0 %v1822
    %2140 = vmatpush.bf16.msra.mxu0 %v1818
    %2141 = vmatpush.bf16.msra.mxu0 %v1814
    %2142 = vmatmul.bf16.gmra.mxu0 %v1224
    %v2143 = vpop.f32.mrf.mxu0
    %v2144 = vadd.f32 %v2131, %v2143
    %v2145 = vpop.f32.mrf.mxu0
    %2146 = vdwg.mxu0
    %2147 = vmatpush.bf16.msra.mxu0 %v1874
    %2148 = vmatpush.bf16.msra.mxu0 %v1870
    %2149 = vmatpush.bf16.msra.mxu0 %v1866
    %2150 = vmatpush.bf16.msra.mxu0 %v1862
    %2151 = vmatpush.bf16.msra.mxu0 %v1858
    %2152 = vmatpush.bf16.msra.mxu0 %v1854
    %2153 = vmatpush.bf16.msra.mxu0 %v1850
    %2154 = vmatpush.bf16.msra.mxu0 %v1846
    %2155 = vmatmul.bf16.gmra.mxu0 %v1225
    %v2156 = vpop.f32.mrf.mxu0
    %v2157 = vadd.f32 %v2144, %v2156
    %v2158 = vpop.f32.mrf.mxu0
    %2159 = vdwg.mxu0
    %2160 = vmatpush.bf16.msra.mxu0 %v1779
    %2161 = vmatpush.bf16.msra.mxu0 %v1775
    %2162 = vmatpush.bf16.msra.mxu0 %v1771
    %2163 = vmatpush.bf16.msra.mxu0 %v1767
    %2164 = vmatpush.bf16.msra.mxu0 %v1763
    %2165 = vmatpush.bf16.msra.mxu0 %v1759
    %2166 = vmatpush.bf16.msra.mxu0 %v1755
    %2167 = vmatpush.bf16.msra.mxu0 %v1751
    %2168 = vmatmul.bf16.gmra.mxu0 %v1222
    %v2169 = vpop.f32.mrf.mxu0
    %v2170 = vadd.f32 %v1359, %v2169
    %v2171 = vpop.f32.mrf.mxu0
    %2172 = vdwg.mxu0
    %2173 = vmatpush.bf16.msra.mxu0 %v1811
    %2174 = vmatpush.bf16.msra.mxu0 %v1807
    %2175 = vmatpush.bf16.msra.mxu0 %v1803
    %2176 = vmatpush.bf16.msra.mxu0 %v1799
    %2177 = vmatpush.bf16.msra.mxu0 %v1795
    %2178 = vmatpush.bf16.msra.mxu0 %v1791
    %2179 = vmatpush.bf16.msra.mxu0 %v1787
    %2180 = vmatpush.bf16.msra.mxu0 %v1783
    %2181 = vmatmul.bf16.gmra.mxu0 %v1223
    %v2182 = vpop.f32.mrf.mxu0
    %v2183 = vadd.f32 %v2170, %v2182
    %v2184 = vpop.f32.mrf.mxu0
    %2185 = vdwg.mxu0
    %2186 = vmatpush.bf16.msra.mxu0 %v1843
    %2187 = vmatpush.bf16.msra.mxu0 %v1839
    %2188 = vmatpush.bf16.msra.mxu0 %v1835
    %2189 = vmatpush.bf16.msra.mxu0 %v1831
    %2190 = vmatpush.bf16.msra.mxu0 %v1827
    %2191 = vmatpush.bf16.msra.mxu0 %v1823
    %2192 = vmatpush.bf16.msra.mxu0 %v1819
    %2193 = vmatpush.bf16.msra.mxu0 %v1815
    %2194 = vmatmul.bf16.gmra.mxu0 %v1224
    %v2195 = vpop.f32.mrf.mxu0
    %v2196 = vadd.f32 %v2183, %v2195
    %v2197 = vpop.f32.mrf.mxu0
    %2198 = vdwg.mxu0
    %2199 = vmatpush.bf16.msra.mxu0 %v1875
    %2200 = vmatpush.bf16.msra.mxu0 %v1871
    %2201 = vmatpush.bf16.msra.mxu0 %v1867
    %2202 = vmatpush.bf16.msra.mxu0 %v1863
    %2203 = vmatpush.bf16.msra.mxu0 %v1859
    %2204 = vmatpush.bf16.msra.mxu0 %v1855
    %2205 = vmatpush.bf16.msra.mxu0 %v1851
    %2206 = vmatpush.bf16.msra.mxu0 %v1847
    %2207 = vmatmul.bf16.gmra.mxu0 %v1225
    %v2208 = vpop.f32.mrf.mxu0
    %v2209 = vadd.f32 %v2196, %v2208
    %v2210 = vpop.f32.mrf.mxu0
    %2211 = vdwg.mxu0
    %v2212 = vrot.slane %v2053, 4
    %v2213 = vadd.f32 %v2053, %v2212
    %v2214 = vrot.slane %v2213, 2
    %v2215 = vadd.f32 %v2213, %v2214
    %v2216 = vrot.slane %v2215, 1
    %v2217 = vadd.f32 %v2215, %v2216
    %v2218 = vrot.slane %v2105, 4
    %v2219 = vadd.f32 %v2105, %v2218
    %v2220 = vrot.slane %v2219, 2
    %v2221 = vadd.f32 %v2219, %v2220
    %v2222 = vrot.slane %v2221, 1
    %v2223 = vadd.f32 %v2221, %v2222
    %v2224 = vrot.slane %v2157, 4
    %v2225 = vadd.f32 %v2157, %v2224
    %v2226 = vrot.slane %v2225, 2
    %v2227 = vadd.f32 %v2225, %v2226
    %v2228 = vrot.slane %v2227, 1
    %v2229 = vadd.f32 %v2227, %v2228
    %v2230 = vrot.slane %v2209, 4
    %v2231 = vadd.f32 %v2209, %v2230
    %v2232 = vrot.slane %v2231, 2
    %v2233 = vadd.f32 %v2231, %v2232
    %v2234 = vrot.slane %v2233, 1
    %v2235 = vadd.f32 %v2233, %v2234
    %v2236 = vmul.f32 %v2217, 0.125
    %v2237 = vmul.f32 %v2223, 0.125
    %v2238 = vmul.f32 %v2229, 0.125
    %v2239 = vmul.f32 %v2235, 0.125
    %v2240 = vmul.f32 %v2053, %v2053
    %v2241 = vmul.f32 %v2105, %v2105
    %v2242 = vmul.f32 %v2157, %v2157
    %v2243 = vmul.f32 %v2209, %v2209
    %v2244 = vrot.slane %v2240, 4
    %v2245 = vadd.f32 %v2240, %v2244
    %v2246 = vrot.slane %v2245, 2
    %v2247 = vadd.f32 %v2245, %v2246
    %v2248 = vrot.slane %v2247, 1
    %v2249 = vadd.f32 %v2247, %v2248
    %v2250 = vrot.slane %v2241, 4
    %v2251 = vadd.f32 %v2241, %v2250
    %v2252 = vrot.slane %v2251, 2
    %v2253 = vadd.f32 %v2251, %v2252
    %v2254 = vrot.slane %v2253, 1
    %v2255 = vadd.f32 %v2253, %v2254
    %v2256 = vrot.slane %v2242, 4
    %v2257 = vadd.f32 %v2242, %v2256
    %v2258 = vrot.slane %v2257, 2
    %v2259 = vadd.f32 %v2257, %v2258
    %v2260 = vrot.slane %v2259, 1
    %v2261 = vadd.f32 %v2259, %v2260
    %v2262 = vrot.slane %v2243, 4
    %v2263 = vadd.f32 %v2243, %v2262
    %v2264 = vrot.slane %v2263, 2
    %v2265 = vadd.f32 %v2263, %v2264
    %v2266 = vrot.slane %v2265, 1
    %v2267 = vadd.f32 %v2265, %v2266
    %v2268 = vmul.f32 %v2249, 0.125
    %v2269 = vmul.f32 %v2255, 0.125
    %v2270 = vmul.f32 %v2261, 0.125
    %v2271 = vmul.f32 %v2267, 0.125
    %v2272 = vmul.f32 %v2236, %v2236
    %v2273 = vmul.f32 %v2237, %v2237
    %v2274 = vmul.f32 %v2238, %v2238
    %v2275 = vmul.f32 %v2239, %v2239
    %v2276 = vsub.f32 %v2268, %v2272
    %v2277 = vsub.f32 %v2269, %v2273
    %v2278 = vsub.f32 %v2270, %v2274
    %v2279 = vsub.f32 %v2271, %v2275
    %v2280 = vmax.f32 %v2276, 0.0
    %v2281 = vmax.f32 %v2277, 0.0
    %v2282 = vmax.f32 %v2278, 0.0
    %v2283 = vmax.f32 %v2279, 0.0
    %v2284 = vsub.f32 %v2053, %v2236
    %v2285 = vsub.f32 %v2105, %v2237
    %v2286 = vsub.f32 %v2157, %v2238
    %v2287 = vsub.f32 %v2209, %v2239
    %v2288 = vadd.f32 %v2280, 1e-05
    %v2289 = vadd.f32 %v2281, 1e-05
    %v2290 = vadd.f32 %v2282, 1e-05
    %v2291 = vadd.f32 %v2283, 1e-05
    %v2292 = vrsqrt.pop %v2288
    %v2293 = vmul.f32 %v2292, %v2288
    %v2294 = vmul.f32 %v2293, %v2292
    %v2295 = vmul.f32 0.5, %v2294
    %v2296 = vsub.f32 1.5, %v2295
    %v2297 = vmul.f32 %v2292, %v2296
    %vm2298 = vweird.f32 %v2288
    %vm2299 = vweird.f32 %v2292
    %vm2300 = vmor %vm2298, %vm2299
    %v2301 = vsel %vm2300, %v2292, %v2297
    %v2302 = vrsqrt.pop %v2289
    %v2303 = vmul.f32 %v2302, %v2289
    %v2304 = vmul.f32 %v2303, %v2302
    %v2305 = vmul.f32 0.5, %v2304
    %v2306 = vsub.f32 1.5, %v2305
    %v2307 = vmul.f32 %v2302, %v2306
    %vm2308 = vweird.f32 %v2289
    %vm2309 = vweird.f32 %v2302
    %vm2310 = vmor %vm2308, %vm2309
    %v2311 = vsel %vm2310, %v2302, %v2307
    %v2312 = vrsqrt.pop %v2290
    %v2313 = vmul.f32 %v2312, %v2290
    %v2314 = vmul.f32 %v2313, %v2312
    %v2315 = vmul.f32 0.5, %v2314
    %v2316 = vsub.f32 1.5, %v2315
    %v2317 = vmul.f32 %v2312, %v2316
    %vm2318 = vweird.f32 %v2290
    %vm2319 = vweird.f32 %v2312
    %vm2320 = vmor %vm2318, %vm2319
    %v2321 = vsel %vm2320, %v2312, %v2317
    %v2322 = vrsqrt.pop %v2291
    %v2323 = vmul.f32 %v2322, %v2291
    %v2324 = vmul.f32 %v2323, %v2322
    %v2325 = vmul.f32 0.5, %v2324
    %v2326 = vsub.f32 1.5, %v2325
    %v2327 = vmul.f32 %v2322, %v2326
    %vm2328 = vweird.f32 %v2291
    %vm2329 = vweird.f32 %v2322
    %vm2330 = vmor %vm2328, %vm2329
    %v2331 = vsel %vm2330, %v2322, %v2327
    %v2332 = vmul.f32 %v2284, %v2301
    %v2333 = vmul.f32 %v2285, %v2311
    %v2334 = vmul.f32 %v2286, %v2321
    %v2335 = vmul.f32 %v2287, %v2331
    %v2336 = vld [vmem:[%s2 + $0x10] sm:$0xf]
    %v2338 = vperm.slane %v2336, 0
    %v2339 = vperm.slane %v2336, 1
    %v2340 = vperm.slane %v2336, 2
    %v2341 = vperm.slane %v2336, 3
    %v2346 = vmul.f32 %v2332, %v2338
    %v2347 = vmul.f32 %v2333, %v2339
    %v2348 = vmul.f32 %v2334, %v2340
    %v2349 = vmul.f32 %v2335, %v2341
    %v2350 = vld [vmem:[%s2 + $0x14] sm:$0xf]
    %v2352 = vperm.slane %v2350, 0
    %v2353 = vperm.slane %v2350, 1
    %v2354 = vperm.slane %v2350, 2
    %v2355 = vperm.slane %v2350, 3
    %v2360 = vadd.f32 %v2346, %v2352
    %v2361 = vadd.f32 %v2347, %v2353
    %v2362 = vadd.f32 %v2348, %v2354
    %v2363 = vadd.f32 %v2349, %v2355
    %v2364 = vmax.f32 %v2360, 0.0
    %v2365 = vmax.f32 %v2361, 0.0
    %v2366 = vmax.f32 %v2362, 0.0
    %v2367 = vmax.f32 %v2363, 0.0
    %v2368 = vpack.c.bf16 %v2364, %v2364
    %v2369 = vpack.c.bf16 %v2365, %v2365
    %v2370 = vpack.c.bf16 %v2366, %v2366
    %v2371 = vpack.c.bf16 %v2367, %v2367
    %v2372 = vld [vmem:[%s5] sm:$0xf]
    %v2373 = vld [vmem:[%s5 + $0x4] sm:$0xf]
    %v2374 = vld [vmem:[%s5 + $0x8] sm:$0xf]
    %v2375 = vld [vmem:[%s5 + $0xc] sm:$0xf]
    %v2376 = vld [vmem:[%s5 + $0x10] sm:$0xf]
    %v2377 = vld [vmem:[%s5 + $0x14] sm:$0xf]
    %v2378 = vld [vmem:[%s5 + $0x18] sm:$0xf]
    %v2379 = vld [vmem:[%s5 + $0x1c] sm:$0xf]
    %v2380 = vld [vmem:[%s5 + $0x20] sm:$0xf]
    %v2381 = vld [vmem:[%s5 + $0x24] sm:$0xf]
    %v2382 = vld [vmem:[%s5 + $0x28] sm:$0xf]
    %v2383 = vld [vmem:[%s5 + $0x2c] sm:$0xf]
    %v2384 = vld [vmem:[%s5 + $0x30] sm:$0xf]
    %v2385 = vld [vmem:[%s5 + $0x34] sm:$0xf]
    %v2386 = vld [vmem:[%s5 + $0x38] sm:$0xf]
    %v2387 = vld [vmem:[%s5 + $0x3c] sm:$0xf]
    %v2388 = vld [vmem:[%s5 + $0x40] sm:$0xf]
    %v2389 = vld [vmem:[%s5 + $0x44] sm:$0xf]
    %v2390 = vld [vmem:[%s5 + $0x48] sm:$0xf]
    %v2391 = vld [vmem:[%s5 + $0x4c] sm:$0xf]
    %v2392 = vld [vmem:[%s5 + $0x50] sm:$0xf]
    %v2393 = vld [vmem:[%s5 + $0x54] sm:$0xf]
    %v2394 = vld [vmem:[%s5 + $0x58] sm:$0xf]
    %v2395 = vld [vmem:[%s5 + $0x5c] sm:$0xf]
    %v2396 = vld [vmem:[%s5 + $0x60] sm:$0xf]
    %v2397 = vld [vmem:[%s5 + $0x64] sm:$0xf]
    %v2398 = vld [vmem:[%s5 + $0x68] sm:$0xf]
    %v2399 = vld [vmem:[%s5 + $0x6c] sm:$0xf]
    %v2400 = vld [vmem:[%s5 + $0x70] sm:$0xf]
    %v2401 = vld [vmem:[%s5 + $0x74] sm:$0xf]
    %v2402 = vld [vmem:[%s5 + $0x78] sm:$0xf]
    %v2403 = vld [vmem:[%s5 + $0x7c] sm:$0xf]
    %v2404 = vld [vmem:[%s5 + $0x80] sm:$0xf]
    %v2405 = vld [vmem:[%s5 + $0x84] sm:$0xf]
    %v2406 = vld [vmem:[%s5 + $0x88] sm:$0xf]
    %v2407 = vld [vmem:[%s5 + $0x8c] sm:$0xf]
    %v2408 = vld [vmem:[%s5 + $0x90] sm:$0xf]
    %v2409 = vld [vmem:[%s5 + $0x94] sm:$0xf]
    %v2410 = vld [vmem:[%s5 + $0x98] sm:$0xf]
    %v2411 = vld [vmem:[%s5 + $0x9c] sm:$0xf]
    %v2412 = vld [vmem:[%s5 + $0xa0] sm:$0xf]
    %v2413 = vld [vmem:[%s5 + $0xa4] sm:$0xf]
    %v2414 = vld [vmem:[%s5 + $0xa8] sm:$0xf]
    %v2415 = vld [vmem:[%s5 + $0xac] sm:$0xf]
    %v2416 = vld [vmem:[%s5 + $0xb0] sm:$0xf]
    %v2417 = vld [vmem:[%s5 + $0xb4] sm:$0xf]
    %v2418 = vld [vmem:[%s5 + $0xb8] sm:$0xf]
    %v2419 = vld [vmem:[%s5 + $0xbc] sm:$0xf]
    %v2420 = vld [vmem:[%s5 + $0xc0] sm:$0xf]
    %v2421 = vld [vmem:[%s5 + $0xc4] sm:$0xf]
    %v2422 = vld [vmem:[%s5 + $0xc8] sm:$0xf]
    %v2423 = vld [vmem:[%s5 + $0xcc] sm:$0xf]
    %v2424 = vld [vmem:[%s5 + $0xd0] sm:$0xf]
    %v2425 = vld [vmem:[%s5 + $0xd4] sm:$0xf]
    %v2426 = vld [vmem:[%s5 + $0xd8] sm:$0xf]
    %v2427 = vld [vmem:[%s5 + $0xdc] sm:$0xf]
    %v2428 = vld [vmem:[%s5 + $0xe0] sm:$0xf]
    %v2429 = vld [vmem:[%s5 + $0xe4] sm:$0xf]
    %v2430 = vld [vmem:[%s5 + $0xe8] sm:$0xf]
    %v2431 = vld [vmem:[%s5 + $0xec] sm:$0xf]
    %v2432 = vld [vmem:[%s5 + $0xf0] sm:$0xf]
    %v2433 = vld [vmem:[%s5 + $0xf4] sm:$0xf]
    %v2434 = vld [vmem:[%s5 + $0xf8] sm:$0xf]
    %v2435 = vld [vmem:[%s5 + $0xfc] sm:$0xf]
    %v2436 = vld [vmem:[%s2 + $0x18] sm:$0x1]
    %v2438 = vperm.slane %v2436, 0
    %v2504 = vunpack.c.l.b16 %v2372
    %v2505 = vunpack.c.l.b16 %v2373
    %v2506 = vunpack.c.l.b16 %v2374
    %v2507 = vunpack.c.l.b16 %v2375
    %v2508 = vunpack.c.l.b16 %v2376
    %v2509 = vunpack.c.l.b16 %v2377
    %v2510 = vunpack.c.l.b16 %v2378
    %v2511 = vunpack.c.l.b16 %v2379
    %v2512 = vunpack.c.l.b16 %v2380
    %v2513 = vunpack.c.l.b16 %v2381
    %v2514 = vunpack.c.l.b16 %v2382
    %v2515 = vunpack.c.l.b16 %v2383
    %v2516 = vunpack.c.l.b16 %v2384
    %v2517 = vunpack.c.l.b16 %v2385
    %v2518 = vunpack.c.l.b16 %v2386
    %v2519 = vunpack.c.l.b16 %v2387
    %v2520 = vunpack.c.l.b16 %v2388
    %v2521 = vunpack.c.l.b16 %v2389
    %v2522 = vunpack.c.l.b16 %v2390
    %v2523 = vunpack.c.l.b16 %v2391
    %v2524 = vunpack.c.l.b16 %v2392
    %v2525 = vunpack.c.l.b16 %v2393
    %v2526 = vunpack.c.l.b16 %v2394
    %v2527 = vunpack.c.l.b16 %v2395
    %v2528 = vunpack.c.l.b16 %v2396
    %v2529 = vunpack.c.l.b16 %v2397
    %v2530 = vunpack.c.l.b16 %v2398
    %v2531 = vunpack.c.l.b16 %v2399
    %v2532 = vunpack.c.l.b16 %v2400
    %v2533 = vunpack.c.l.b16 %v2401
    %v2534 = vunpack.c.l.b16 %v2402
    %v2535 = vunpack.c.l.b16 %v2403
    %v2536 = vunpack.c.l.b16 %v2404
    %v2537 = vunpack.c.l.b16 %v2405
    %v2538 = vunpack.c.l.b16 %v2406
    %v2539 = vunpack.c.l.b16 %v2407
    %v2540 = vunpack.c.l.b16 %v2408
    %v2541 = vunpack.c.l.b16 %v2409
    %v2542 = vunpack.c.l.b16 %v2410
    %v2543 = vunpack.c.l.b16 %v2411
    %v2544 = vunpack.c.l.b16 %v2412
    %v2545 = vunpack.c.l.b16 %v2413
    %v2546 = vunpack.c.l.b16 %v2414
    %v2547 = vunpack.c.l.b16 %v2415
    %v2548 = vunpack.c.l.b16 %v2416
    %v2549 = vunpack.c.l.b16 %v2417
    %v2550 = vunpack.c.l.b16 %v2418
    %v2551 = vunpack.c.l.b16 %v2419
    %v2552 = vunpack.c.l.b16 %v2420
    %v2553 = vunpack.c.l.b16 %v2421
    %v2554 = vunpack.c.l.b16 %v2422
    %v2555 = vunpack.c.l.b16 %v2423
    %v2556 = vunpack.c.l.b16 %v2424
    %v2557 = vunpack.c.l.b16 %v2425
    %v2558 = vunpack.c.l.b16 %v2426
    %v2559 = vunpack.c.l.b16 %v2427
    %v2560 = vunpack.c.l.b16 %v2428
    %v2561 = vunpack.c.l.b16 %v2429
    %v2562 = vunpack.c.l.b16 %v2430
    %v2563 = vunpack.c.l.b16 %v2431
    %v2564 = vunpack.c.l.b16 %v2432
    %v2565 = vunpack.c.l.b16 %v2433
    %v2566 = vunpack.c.l.b16 %v2434
    %v2567 = vunpack.c.l.b16 %v2435
    %v2568 = vpack.c.b16 %v2505, %v2504
    %v2569 = vpack.c.b16 %v2507, %v2506
    %v2570 = vpack.c.b16 %v2509, %v2508
    %v2571 = vpack.c.b16 %v2511, %v2510
    %v2572 = vpack.c.b16 %v2513, %v2512
    %v2573 = vpack.c.b16 %v2515, %v2514
    %v2574 = vpack.c.b16 %v2517, %v2516
    %v2575 = vpack.c.b16 %v2519, %v2518
    %v2576 = vpack.c.b16 %v2521, %v2520
    %v2577 = vpack.c.b16 %v2523, %v2522
    %v2578 = vpack.c.b16 %v2525, %v2524
    %v2579 = vpack.c.b16 %v2527, %v2526
    %v2580 = vpack.c.b16 %v2529, %v2528
    %v2581 = vpack.c.b16 %v2531, %v2530
    %v2582 = vpack.c.b16 %v2533, %v2532
    %v2583 = vpack.c.b16 %v2535, %v2534
    %v2584 = vpack.c.b16 %v2537, %v2536
    %v2585 = vpack.c.b16 %v2539, %v2538
    %v2586 = vpack.c.b16 %v2541, %v2540
    %v2587 = vpack.c.b16 %v2543, %v2542
    %v2588 = vpack.c.b16 %v2545, %v2544
    %v2589 = vpack.c.b16 %v2547, %v2546
    %v2590 = vpack.c.b16 %v2549, %v2548
    %v2591 = vpack.c.b16 %v2551, %v2550
    %v2592 = vpack.c.b16 %v2553, %v2552
    %v2593 = vpack.c.b16 %v2555, %v2554
    %v2594 = vpack.c.b16 %v2557, %v2556
    %v2595 = vpack.c.b16 %v2559, %v2558
    %v2596 = vpack.c.b16 %v2561, %v2560
    %v2597 = vpack.c.b16 %v2563, %v2562
    %v2598 = vpack.c.b16 %v2565, %v2564
    %v2599 = vpack.c.b16 %v2567, %v2566
    %2632 = vmatpush.bf16.msra.mxu0 %v2575
    %2633 = vmatpush.bf16.msra.mxu0 %v2574
    %2634 = vmatpush.bf16.msra.mxu0 %v2573
    %2635 = vmatpush.bf16.msra.mxu0 %v2572
    %2636 = vmatpush.bf16.msra.mxu0 %v2571
    %2637 = vmatpush.bf16.msra.mxu0 %v2570
    %2638 = vmatpush.bf16.msra.mxu0 %v2569
    %2639 = vmatpush.bf16.msra.mxu0 %v2568
    %2640 = vmatmul.bf16.gmra.mxu0 %v2368
    %v2641 = vpop.f32.mrf.mxu0
    %v2642 = vadd.f32 %v2438, %v2641
    %v2643 = vpop.f32.mrf.mxu0
    %2644 = vdwg.mxu0
    %2645 = vmatpush.bf16.msra.mxu0 %v2583
    %2646 = vmatpush.bf16.msra.mxu0 %v2582
    %2647 = vmatpush.bf16.msra.mxu0 %v2581
    %2648 = vmatpush.bf16.msra.mxu0 %v2580
    %2649 = vmatpush.bf16.msra.mxu0 %v2579
    %2650 = vmatpush.bf16.msra.mxu0 %v2578
    %2651 = vmatpush.bf16.msra.mxu0 %v2577
    %2652 = vmatpush.bf16.msra.mxu0 %v2576
    %2653 = vmatmul.bf16.gmra.mxu0 %v2369
    %v2654 = vpop.f32.mrf.mxu0
    %v2655 = vadd.f32 %v2642, %v2654
    %v2656 = vpop.f32.mrf.mxu0
    %2657 = vdwg.mxu0
    %2658 = vmatpush.bf16.msra.mxu0 %v2591
    %2659 = vmatpush.bf16.msra.mxu0 %v2590
    %2660 = vmatpush.bf16.msra.mxu0 %v2589
    %2661 = vmatpush.bf16.msra.mxu0 %v2588
    %2662 = vmatpush.bf16.msra.mxu0 %v2587
    %2663 = vmatpush.bf16.msra.mxu0 %v2586
    %2664 = vmatpush.bf16.msra.mxu0 %v2585
    %2665 = vmatpush.bf16.msra.mxu0 %v2584
    %2666 = vmatmul.bf16.gmra.mxu0 %v2370
    %v2667 = vpop.f32.mrf.mxu0
    %v2668 = vadd.f32 %v2655, %v2667
    %v2669 = vpop.f32.mrf.mxu0
    %2670 = vdwg.mxu0
    %2671 = vmatpush.bf16.msra.mxu0 %v2599
    %2672 = vmatpush.bf16.msra.mxu0 %v2598
    %2673 = vmatpush.bf16.msra.mxu0 %v2597
    %2674 = vmatpush.bf16.msra.mxu0 %v2596
    %2675 = vmatpush.bf16.msra.mxu0 %v2595
    %2676 = vmatpush.bf16.msra.mxu0 %v2594
    %2677 = vmatpush.bf16.msra.mxu0 %v2593
    %2678 = vmatpush.bf16.msra.mxu0 %v2592
    %2679 = vmatmul.bf16.gmra.mxu0 %v2371
    %v2680 = vpop.f32.mrf.mxu0
    %v2681 = vadd.f32 %v2668, %v2680
    %v2682 = vpop.f32.mrf.mxu0
    %2683 = vdwg.mxu0
    %vm2684 = vcmask 261120
    %v2685 = vsel %vm2684, %v2681, 0.0
    %v2686 = vrot.slane %v2685, 4
    %v2687 = vadd.f32 %v2685, %v2686
    %v2688 = vrot.slane %v2687, 2
    %v2689 = vadd.f32 %v2687, %v2688
    %v2690 = vrot.slane %v2689, 1
    %v2691 = vadd.f32 %v2689, %v2690
    %v2692 = vmul.f32 %v2691, 0.125
    %v2693 = vmul.f32 %v2681, %v2681
    %v2694 = vsel %vm2684, %v2693, 0.0
    %v2695 = vrot.slane %v2694, 4
    %v2696 = vadd.f32 %v2694, %v2695
    %v2697 = vrot.slane %v2696, 2
    %v2698 = vadd.f32 %v2696, %v2697
    %v2699 = vrot.slane %v2698, 1
    %v2700 = vadd.f32 %v2698, %v2699
    %v2701 = vmul.f32 %v2700, 0.125
    %v2702 = vmul.f32 %v2692, %v2692
    %v2703 = vsub.f32 %v2701, %v2702
    %v2704 = vmax.f32 %v2703, 0.0
    %v2705 = vsub.f32 %v2681, %v2692
    %v2706 = vadd.f32 %v2704, 1e-05
    %v2707 = vrsqrt.pop %v2706
    %v2708 = vmul.f32 %v2707, %v2706
    %v2709 = vmul.f32 %v2708, %v2707
    %v2710 = vmul.f32 0.5, %v2709
    %v2711 = vsub.f32 1.5, %v2710
    %v2712 = vmul.f32 %v2707, %v2711
    %vm2713 = vweird.f32 %v2706
    %vm2714 = vweird.f32 %v2707
    %vm2715 = vmor %vm2713, %vm2714
    %v2716 = vsel %vm2715, %v2707, %v2712
    %v2717 = vmul.f32 %v2705, %v2716
    %v2718 = vld [vmem:[%s2 + $0x19] sm:$0x1]
    %v2720 = vperm.slane %v2718, 0
    %v2722 = vmul.f32 %v2717, %v2720
    %v2723 = vld [vmem:[%s2 + $0x1a] sm:$0x1]
    %v2725 = vperm.slane %v2723, 0
    %v2727 = vadd.f32 %v2722, %v2725
    %v2728 = vmax.f32 %v2727, 0.0
    %v2729 = vpack.c.bf16 %v75, %v75
    %v2730 = vld [vmem:[%s6] sm:$0x7]
    %v2731 = vld [vmem:[%s2 + $0x1b] sm:$0x1]
    %v2733 = vperm.slane %v2731, 0
    %vm2735 = vcmask 48128
    %v2737 = vsel %vm2735, %v2729, 0
    %vm2739 = vcmask 1042432
    %v2741 = vsel %vm2739, %v2730, 0
    %2743 = vmatpush.bf16.msra.mxu0 0
    %2744 = vmatpush.bf16.msra.mxu0 0
    %2745 = vmatpush.bf16.msra.mxu0 0
    %2746 = vmatpush.bf16.msra.mxu0 0
    %2747 = vmatpush.bf16.msra.mxu0 0
    %2748 = vmatpush.bf16.msra.mxu0 0
    %2749 = vmatpush.bf16.msra.mxu0 0
    %2750 = vmatpush.bf16.msra.mxu0 %v2741
    %2751 = vmatmul.bf16.gmra.mxu0 %v2737
    %v2752 = vpop.f32.mrf.mxu0
    %v2753 = vadd.f32 %v2733, %v2752
    %v2754 = vpop.f32.mrf.mxu0
    %2755 = vdwg.mxu0
    %vm2756 = vcmask 523264
    %v2757 = vsel %vm2756, %v2753, 0.0
    %v2758 = vrot.slane %v2757, 4
    %v2759 = vadd.f32 %v2757, %v2758
    %v2760 = vrot.slane %v2759, 2
    %v2761 = vadd.f32 %v2759, %v2760
    %v2762 = vrot.slane %v2761, 1
    %v2763 = vadd.f32 %v2761, %v2762
    %v2764 = vmul.f32 %v2763, 0.125
    %v2765 = vmul.f32 %v2753, %v2753
    %v2766 = vsel %vm2756, %v2765, 0.0
    %v2767 = vrot.slane %v2766, 4
    %v2768 = vadd.f32 %v2766, %v2767
    %v2769 = vrot.slane %v2768, 2
    %v2770 = vadd.f32 %v2768, %v2769
    %v2771 = vrot.slane %v2770, 1
    %v2772 = vadd.f32 %v2770, %v2771
    %v2773 = vmul.f32 %v2772, 0.125
    %v2774 = vmul.f32 %v2764, %v2764
    %v2775 = vsub.f32 %v2773, %v2774
    %v2776 = vmax.f32 %v2775, 0.0
    %v2777 = vsub.f32 %v2753, %v2764
    %v2778 = vadd.f32 %v2776, 1e-05
    %v2779 = vrsqrt.pop %v2778
    %v2780 = vmul.f32 %v2779, %v2778
    %v2781 = vmul.f32 %v2780, %v2779
    %v2782 = vmul.f32 0.5, %v2781
    %v2783 = vsub.f32 1.5, %v2782
    %v2784 = vmul.f32 %v2779, %v2783
    %vm2785 = vweird.f32 %v2778
    %vm2786 = vweird.f32 %v2779
    %vm2787 = vmor %vm2785, %vm2786
    %v2788 = vsel %vm2787, %v2779, %v2784
    %v2789 = vmul.f32 %v2777, %v2788
    %v2790 = vld [vmem:[%s2 + $0x1c] sm:$0x1]
    %v2792 = vperm.slane %v2790, 0
    %v2794 = vmul.f32 %v2789, %v2792
    %v2795 = vld [vmem:[%s2 + $0x1d] sm:$0x1]
    %v2797 = vperm.slane %v2795, 0
    %v2799 = vadd.f32 %v2794, %v2797
    %v2800 = vmax.f32 %v2799, 0.0
    %v2801 = vpack.c.bf16 %v2800, %v2800
    %v2802 = vld [vmem:[%s7] sm:$0xf]
    %v2803 = vld [vmem:[%s7 + $0x4] sm:$0xf]
    %v2804 = vld [vmem:[%s7 + $0x8] sm:$0xf]
    %v2805 = vld [vmem:[%s7 + $0xc] sm:$0xf]
    %v2806 = vld [vmem:[%s7 + $0x10] sm:$0xf]
    %v2807 = vld [vmem:[%s7 + $0x14] sm:$0xf]
    %v2808 = vld [vmem:[%s7 + $0x18] sm:$0xf]
    %v2809 = vld [vmem:[%s7 + $0x1c] sm:$0xf]
    %v2810 = vld [vmem:[%s2 + $0x1e] sm:$0x1]
    %v2812 = vperm.slane %v2810, 0
    %v2822 = vunpack.c.l.b16 %v2802
    %v2823 = vunpack.c.l.b16 %v2803
    %v2824 = vunpack.c.l.b16 %v2804
    %v2825 = vunpack.c.l.b16 %v2805
    %v2826 = vunpack.c.l.b16 %v2806
    %v2827 = vunpack.c.l.b16 %v2807
    %v2828 = vunpack.c.l.b16 %v2808
    %v2829 = vunpack.c.l.b16 %v2809
    %v2830 = vpack.c.b16 %v2823, %v2822
    %v2831 = vpack.c.b16 %v2825, %v2824
    %v2832 = vpack.c.b16 %v2827, %v2826
    %v2833 = vpack.c.b16 %v2829, %v2828
    %v2839 = vsel %vm2756, %v2801, 0
    %2841 = vmatpush.bf16.msra.mxu0 0
    %2842 = vmatpush.bf16.msra.mxu0 0
    %2843 = vmatpush.bf16.msra.mxu0 0
    %2844 = vmatpush.bf16.msra.mxu0 0
    %2845 = vmatpush.bf16.msra.mxu0 %v2833
    %2846 = vmatpush.bf16.msra.mxu0 %v2832
    %2847 = vmatpush.bf16.msra.mxu0 %v2831
    %2848 = vmatpush.bf16.msra.mxu0 %v2830
    %2849 = vmatmul.bf16.gmra.mxu0 %v2839
    %v2850 = vpop.f32.mrf.mxu0
    %v2851 = vadd.f32 %v2812, %v2850
    %v2852 = vpop.f32.mrf.mxu0
    %2853 = vdwg.mxu0
    %v2854 = vsel %vm2684, %v2851, 0.0
    %v2855 = vrot.slane %v2854, 4
    %v2856 = vadd.f32 %v2854, %v2855
    %v2857 = vrot.slane %v2856, 2
    %v2858 = vadd.f32 %v2856, %v2857
    %v2859 = vrot.slane %v2858, 1
    %v2860 = vadd.f32 %v2858, %v2859
    %v2861 = vmul.f32 %v2860, 0.125
    %v2862 = vmul.f32 %v2851, %v2851
    %v2863 = vsel %vm2684, %v2862, 0.0
    %v2864 = vrot.slane %v2863, 4
    %v2865 = vadd.f32 %v2863, %v2864
    %v2866 = vrot.slane %v2865, 2
    %v2867 = vadd.f32 %v2865, %v2866
    %v2868 = vrot.slane %v2867, 1
    %v2869 = vadd.f32 %v2867, %v2868
    %v2870 = vmul.f32 %v2869, 0.125
    %v2871 = vmul.f32 %v2861, %v2861
    %v2872 = vsub.f32 %v2870, %v2871
    %v2873 = vmax.f32 %v2872, 0.0
    %v2874 = vsub.f32 %v2851, %v2861
    %v2875 = vadd.f32 %v2873, 1e-05
    %v2876 = vrsqrt.pop %v2875
    %v2877 = vmul.f32 %v2876, %v2875
    %v2878 = vmul.f32 %v2877, %v2876
    %v2879 = vmul.f32 0.5, %v2878
    %v2880 = vsub.f32 1.5, %v2879
    %v2881 = vmul.f32 %v2876, %v2880
    %vm2882 = vweird.f32 %v2875
    %vm2883 = vweird.f32 %v2876
    %vm2884 = vmor %vm2882, %vm2883
    %v2885 = vsel %vm2884, %v2876, %v2881
    %v2886 = vmul.f32 %v2874, %v2885
    %v2887 = vld [vmem:[%s2 + $0x1f] sm:$0x1]
    %v2889 = vperm.slane %v2887, 0
    %v2891 = vmul.f32 %v2886, %v2889
    %v2892 = vld [vmem:[%s2 + $0x20] sm:$0x1]
    %v2894 = vperm.slane %v2892, 0
    %v2896 = vadd.f32 %v2891, %v2894
    %v2897 = vmax.f32 %v2896, 0.0
    %v2898 = vpack.c.bf16 %v2728, %v2728
    %v2899 = vld [vmem:[%s8] sm:$0xf]
    %v2900 = vld [vmem:[%s8 + $0x4] sm:$0xf]
    %v2901 = vld [vmem:[%s8 + $0x8] sm:$0xf]
    %v2902 = vld [vmem:[%s8 + $0xc] sm:$0xf]
    %v2903 = vpack.c.bf16 %v2897, %v2897
    %v2904 = vld [vmem:[%s9] sm:$0xf]
    %v2905 = vld [vmem:[%s9 + $0x4] sm:$0xf]
    %v2906 = vld [vmem:[%s9 + $0x8] sm:$0xf]
    %v2907 = vld [vmem:[%s9 + $0xc] sm:$0xf]
    %v2912 = vunpack.c.l.b16 %v2904
    %v2913 = vunpack.c.l.b16 %v2905
    %v2914 = vunpack.c.l.b16 %v2906
    %v2915 = vunpack.c.l.b16 %v2907
    %v2916 = vpack.c.b16 %v2913, %v2912
    %v2917 = vpack.c.b16 %v2915, %v2914
    %v2921 = vsel %vm2684, %v2903, 0
    %2923 = vmatpush.bf16.msra.mxu0 0
    %2924 = vmatpush.bf16.msra.mxu0 0
    %2925 = vmatpush.bf16.msra.mxu0 0
    %2926 = vmatpush.bf16.msra.mxu0 0
    %2927 = vmatpush.bf16.msra.mxu0 0
    %2928 = vmatpush.bf16.msra.mxu0 0
    %2929 = vmatpush.bf16.msra.mxu0 %v2917
    %2930 = vmatpush.bf16.msra.mxu0 %v2916
    %2931 = vmatmul.bf16.gmra.mxu0 %v2921
    %v2932 = vpop.f32.mrf.mxu0
    %v2933 = vadd.f32 0.0, %v2932
    %v2934 = vpop.f32.mrf.mxu0
    %2935 = vdwg.mxu0
    %v2940 = vunpack.c.l.b16 %v2899
    %v2941 = vunpack.c.l.b16 %v2900
    %v2942 = vunpack.c.l.b16 %v2901
    %v2943 = vunpack.c.l.b16 %v2902
    %v2944 = vpack.c.b16 %v2941, %v2940
    %v2945 = vpack.c.b16 %v2943, %v2942
    %v2949 = vsel %vm2684, %v2898, 0
    %2951 = vmatpush.bf16.msra.mxu0 0
    %2952 = vmatpush.bf16.msra.mxu0 0
    %2953 = vmatpush.bf16.msra.mxu0 0
    %2954 = vmatpush.bf16.msra.mxu0 0
    %2955 = vmatpush.bf16.msra.mxu0 0
    %2956 = vmatpush.bf16.msra.mxu0 0
    %2957 = vmatpush.bf16.msra.mxu0 %v2945
    %2958 = vmatpush.bf16.msra.mxu0 %v2944
    %2959 = vmatmul.bf16.gmra.mxu0 %v2949
    %v2960 = vpop.f32.mrf.mxu0
    %v2961 = vadd.f32 %v2933, %v2960
    %v2962 = vpop.f32.mrf.mxu0
    %2963 = vdwg.mxu0
    %v2964 = vld [vmem:[%s2 + $0x21] sm:$0x1]
    %v2966 = vperm.slane %v2964, 0
    %v2968 = vadd.f32 %v2961, %v2966
    %v2969 = vsel %vm2756, %v2968, 0.0
    %v2970 = vrot.slane %v2969, 4
    %v2971 = vadd.f32 %v2969, %v2970
    %v2972 = vrot.slane %v2971, 2
    %v2973 = vadd.f32 %v2971, %v2972
    %v2974 = vrot.slane %v2973, 1
    %v2975 = vadd.f32 %v2973, %v2974
    %v2976 = vmul.f32 %v2975, 0.125
    %v2977 = vmul.f32 %v2968, %v2968
    %v2978 = vsel %vm2756, %v2977, 0.0
    %v2979 = vrot.slane %v2978, 4
    %v2980 = vadd.f32 %v2978, %v2979
    %v2981 = vrot.slane %v2980, 2
    %v2982 = vadd.f32 %v2980, %v2981
    %v2983 = vrot.slane %v2982, 1
    %v2984 = vadd.f32 %v2982, %v2983
    %v2985 = vmul.f32 %v2984, 0.125
    %v2986 = vmul.f32 %v2976, %v2976
    %v2987 = vsub.f32 %v2985, %v2986
    %v2988 = vmax.f32 %v2987, 0.0
    %v2989 = vsub.f32 %v2968, %v2976
    %v2990 = vadd.f32 %v2988, 1e-05
    %v2991 = vrsqrt.pop %v2990
    %v2992 = vmul.f32 %v2991, %v2990
    %v2993 = vmul.f32 %v2992, %v2991
    %v2994 = vmul.f32 0.5, %v2993
    %v2995 = vsub.f32 1.5, %v2994
    %v2996 = vmul.f32 %v2991, %v2995
    %vm2997 = vweird.f32 %v2990
    %vm2998 = vweird.f32 %v2991
    %vm2999 = vmor %vm2997, %vm2998
    %v3000 = vsel %vm2999, %v2991, %v2996
    %v3001 = vmul.f32 %v2989, %v3000
    %v3002 = vld [vmem:[%s2 + $0x22] sm:$0x1]
    %v3004 = vperm.slane %v3002, 0
    %v3006 = vmul.f32 %v3001, %v3004
    %v3007 = vld [vmem:[%s2 + $0x23] sm:$0x1]
    %v3009 = vperm.slane %v3007, 0
    %v3011 = vadd.f32 %v3006, %v3009
    %v3012 = vmax.f32 %v3011, 0.0
    %v3013 = vpack.c.bf16 %v3012, %v3012
    %v3014 = vld [vmem:[%s10] sm:$0xf]
    %v3015 = vld [vmem:[%s10 + $0x4] sm:$0xf]
    %v3016 = vld [vmem:[%s10 + $0x8] sm:$0xf]
    %v3017 = vld [vmem:[%s10 + $0xc] sm:$0xf]
    %v3018 = vld [vmem:[%s10 + $0x10] sm:$0xf]
    %v3019 = vld [vmem:[%s10 + $0x14] sm:$0xf]
    %v3020 = vld [vmem:[%s10 + $0x18] sm:$0xf]
    %v3021 = vld [vmem:[%s10 + $0x1c] sm:$0xf]
    %v3022 = vld [vmem:[%s2 + $0x24] sm:$0x1]
    %v3024 = vperm.slane %v3022, 0
    %v3034 = vunpack.c.l.b16 %v3014
    %v3035 = vunpack.c.l.b16 %v3015
    %v3036 = vunpack.c.l.b16 %v3016
    %v3037 = vunpack.c.l.b16 %v3017
    %v3038 = vunpack.c.l.b16 %v3018
    %v3039 = vunpack.c.l.b16 %v3019
    %v3040 = vunpack.c.l.b16 %v3020
    %v3041 = vunpack.c.l.b16 %v3021
    %v3042 = vpack.c.b16 %v3035, %v3034
    %v3043 = vpack.c.b16 %v3037, %v3036
    %v3044 = vpack.c.b16 %v3039, %v3038
    %v3045 = vpack.c.b16 %v3041, %v3040
    %v3051 = vsel %vm2756, %v3013, 0
    %3053 = vmatpush.bf16.msra.mxu0 0
    %3054 = vmatpush.bf16.msra.mxu0 0
    %3055 = vmatpush.bf16.msra.mxu0 0
    %3056 = vmatpush.bf16.msra.mxu0 0
    %3057 = vmatpush.bf16.msra.mxu0 %v3045
    %3058 = vmatpush.bf16.msra.mxu0 %v3044
    %3059 = vmatpush.bf16.msra.mxu0 %v3043
    %3060 = vmatpush.bf16.msra.mxu0 %v3042
    %3061 = vmatmul.bf16.gmra.mxu0 %v3051
    %v3062 = vpop.f32.mrf.mxu0
    %v3063 = vadd.f32 %v3024, %v3062
    %v3064 = vpop.f32.mrf.mxu0
    %3065 = vdwg.mxu0
    %v3066 = vtanh.pop %v3063
    %v3067 = vld [vmem:[%s2 + $0x26] sm:$0x1]
    %v3069 = vperm.slane %v3067, 0
    %v3071 = vmul.f32 %v3069, %v3066
    %v3072 = vld [vmem:[%s2 + $0x25] sm:$0x1]
    %v3074 = vperm.slane %v3072, 0
    %v3076 = vadd.f32 %v3071, %v3074
    %vm3077 = vcmask 15360
    %3078 = vst.msk [vmem:[%s11] sm:$0xff] %vm3077, %v3076
    // Predicated region
    $region54: #{tpu_custom_call.1} parent=1 // pred_check
      _
    $region55: #{tpu_custom_call.1} parent=1 // pred_check_branch
      %3080 = sbr.rel (0) target = $region57
    $region56: #{tpu_custom_call.1} parent=1 // pred_region
      _
    $region57: #{tpu_custom_call.1} parent=1 // pred_fallthru
      _
    // Predicated region
    $region58: #{tpu_custom_call.1} parent=1 // pred_check
      _
    $region59: #{tpu_custom_call.1} parent=1 // pred_check_branch
      %3082 = sbr.rel (0) target = $region61
    $region60: #{tpu_custom_call.1} parent=1 // pred_region
      _
    $region61: #{tpu_custom_call.1} parent=1 // pred_fallthru
      _
    %3083 = vsyncpa [#allocation3], 1
    %3084 = vsyncpa [#allocation5], 1

</llo_original>
